<compile_context>
chip_gen: v5e
topology: v5e:2x2
jax: 0.10.0
libtpu: 0.0.40
codegen_flags: <defaults>
</compile_context>

<pallas_src>
import jax
import jax.numpy as jnp
from jax.experimental import pallas as pl
from jax.experimental.pallas import tpu as pltpu

# ----------------------------- sizes (small) -------------------------------
HID = 16         # VAE hidden channels
ZC = 4           # VAE latent channels (SD-1.5 uses 4)
D = 32           # text-encoder hidden size
NH = 2           # attention heads
DH = D // NH
SEQ = 8          # stand-in for tokenizer.model_max_length (77)
VOCAB = 64       # stand-in for CLIP vocab
NLAYERS = 2      # stand-in for 12 CLIP layers
ATT_SCALE = 1.0 / float(DH) ** 0.5


# ===========================================================================
# VAE encoder: fused 3x3 stride-2 conv kernels
# ===========================================================================
def _pad_space_to_depth(x_nhwc, pad_value):
    """pad-1 (with `pad_value`) then split into the 4 2x2 parity planes.

    Returns (4, N, H//2 + 1, W//2 + 1, C) where plane p = 2*ph + pw holds
    x_pad[:, ph::2, pw::2, :].  This lets the conv kernel read every 3x3 tap
    as an *unstrided* static slice (no 9x im2col tensor in HBM).
    """
    N, H, W, C = x_nhwc.shape
    assert H % 2 == 0 and W % 2 == 0
    xp = jnp.pad(x_nhwc, ((0, 0), (1, 1), (1, 1), (0, 0)),
                 constant_values=pad_value)
    Hp, Wp = H + 2, W + 2
    x6 = xp.reshape(N, Hp // 2, 2, Wp // 2, 2, C).transpose(2, 4, 0, 1, 3, 5)
    return x6.reshape(4, N, Hp // 2, Wp // 2, C)


def conv3x3_s2_fused(x_nhwc, w9, b, *, epilogue="none",
                     eps=None, in_scale=1.0, in_shift=0.0):
    """3x3 / stride-2 / pad-1 conv (NHWC), fused input-normalize + epilogue.

    w9: (9, Cin, Cout) pre-reshaped weights (tap index = kh*3 + kw).
    epilogue: "silu" | "gauss" | "none".  "gauss" interprets the conv output
    as [mean | logvar] and returns mean + exp(0.5*clamp(logvar)) * eps.
    """
    N, H, W, Cin = x_nhwc.shape
    Cout = w9.shape[-1]
    Ho, Wo = H // 2, W // 2
    M = N * Ho * Wo

    # Padding must equal zero *after* the fused affine, matching pad(normalize(x)).
    pad_value = 0.0 if (in_scale == 1.0 and in_shift == 0.0) else -in_shift / in_scale
    xs2d = _pad_space_to_depth(x_nhwc.astype(jnp.float32), pad_value)
    out_c = ZC if epilogue == "gauss" else Cout

    def kernel(*refs):
        if epilogue == "gauss":
            x_ref, w_ref, b_ref, eps_ref, o_ref = refs
        else:
            x_ref, w_ref, b_ref, o_ref = refs
        acc = jnp.zeros((M, Cout), jnp.float32)
        for kh in range(3):                      # 9 shifted matmuls, accumulated
            for kw in range(3):
                p = (kh % 2) * 2 + (kw % 2)
                oh, ow = kh // 2, kw // 2
                xt = x_ref[p, :, oh:oh + Ho, ow:ow + Wo, :].reshape(M, Cin)
                if in_scale != 1.0 or in_shift != 0.0:
                    xt = xt * in_scale + in_shift        # fused pixel normalize
                acc = acc + jnp.dot(xt, w_ref[kh * 3 + kw],
                                    preferred_element_type=jnp.float32)
        acc = acc + b_ref[...]
        if epilogue == "silu":
            o_ref[...] = acc * pl.reciprocal(1.0 + jnp.exp(-acc), approx=True)
        elif epilogue == "gauss":
            mean = acc[:, :ZC]
            logvar = jnp.clip(acc[:, ZC:], -30.0, 20.0)
            o_ref[...] = mean + jnp.exp(0.5 * logvar) * eps_ref[...]
        else:
            o_ref[...] = acc

    args = [xs2d, w9, b.reshape(1, Cout).astype(jnp.float32)]
    if epilogue == "gauss":
        args.append(eps)
    y = pl.pallas_call(
        kernel,
        out_shape=jax.ShapeDtypeStruct((M, out_c), jnp.float32),
    )(*args)
    return y.reshape(N, Ho, Wo, out_c)


def vae_encode_sample(vp, frames_nhwc, eps_key, normalize):
    """Synthetic stand-in for vae.encode(...).latent_dist.sample()."""
    scale = (2.0 / 255.0) if normalize else 1.0
    shift = -1.0 if normalize else 0.0
    x = conv3x3_s2_fused(frames_nhwc, vp["w1"], vp["b1"], epilogue="silu",
                         in_scale=scale, in_shift=shift)
    x = conv3x3_s2_fused(x, vp["w2"], vp["b2"], epilogue="silu")
    N, H, W, _ = x.shape
    eps = jax.random.normal(eps_key, (N * (H // 2) * (W // 2), ZC), jnp.float32)
    z = conv3x3_s2_fused(x, vp["w3"], vp["b3"], epilogue="gauss", eps=eps)
    return z                                        # (N, h', w', ZC) NHWC


def encode_frames_with_vae(vp, frames_nhwc, b, f, eps_key, normalize):
    """frames_nhwc: (b*f, H, W, C) -> latents (b, ZC, f, h', w')."""
    z = vae_encode_sample(vp, frames_nhwc, eps_key, normalize)
    hh, ww = z.shape[1:3]
    z = jnp.transpose(z, (0, 3, 1, 2))              # (b*f, ZC, h', w')
    return z.reshape(b, f, ZC, hh, ww).transpose(0, 2, 1, 3, 4)


# ===========================================================================
# CLIP text encoder: whole transformer stack in one pallas_call
# ===========================================================================
def _clip_stack_kernel(x0_ref, ln1g, ln1b, wqkv, bqkv, wo, bo,
                       ln2g, ln2b, w1, b1, w2, b2, lnfg, lnfb, o_ref):
    l = pl.program_id(0)
    nl = pl.num_programs(0)

    @pl.when(l == 0)
    def _():                                       # load residual stream once
        o_ref[...] = x0_ref[...]

    def layernorm(x, g, b):
        mu = jnp.mean(x, axis=-1, keepdims=True)
        xc = x - mu
        var = jnp.mean(xc * xc, axis=-1, keepdims=True)
        return xc * jax.lax.rsqrt(var + 1e-5) * g + b

    x = o_ref[...]                                 # (SEQ, D), VMEM-resident

    # ---- attention block: LN1 -> fused QKV -> causal attention -> O proj ----
    h = layernorm(x, ln1g[0], ln1b[0])
    qkv = jnp.dot(h, wqkv[0], preferred_element_type=jnp.float32) + bqkv[0]
    row = jax.lax.broadcasted_iota(jnp.int32, (SEQ, SEQ), 0)
    col = jax.lax.broadcasted_iota(jnp.int32, (SEQ, SEQ), 1)
    causal = col <= row                            # built once, shared by heads
    heads = []
    for hd in range(NH):
        qh = qkv[:, hd * DH:(hd + 1) * DH] * ATT_SCALE
        kh = qkv[:, D + hd * DH:D + (hd + 1) * DH]
        vh = qkv[:, 2 * D + hd * DH:2 * D + (hd + 1) * DH]
        # q @ k^T without an explicit transpose (MXU handles it):
        s = jax.lax.dot_general(qh, kh, (((1,), (1,)), ((), ())),
                                preferred_element_type=jnp.float32)
        s = jnp.where(causal, s, jnp.float32(-1e9))
        s = s - jnp.max(s, axis=-1, keepdims=True)
        p = jnp.exp(s)
        p = p * pl.reciprocal(jnp.sum(p, axis=-1, keepdims=True), approx=True)
        heads.append(jnp.dot(p, vh, preferred_element_type=jnp.float32))
    attn = jnp.concatenate(heads, axis=-1)         # (SEQ, D)
    x = x + jnp.dot(attn, wo[0], preferred_element_type=jnp.float32) + bo[0]

    # ---- MLP block: LN2 -> up -> quick-gelu -> down ----
    h = layernorm(x, ln2g[0], ln2b[0])
    h = jnp.dot(h, w1[0], preferred_element_type=jnp.float32) + b1[0]
    h = h * pl.reciprocal(1.0 + jnp.exp(-1.702 * h), approx=True)   # quick-gelu
    x = x + jnp.dot(h, w2[0], preferred_element_type=jnp.float32) + b2[0]

    @pl.when(l < nl - 1)
    def _():
        o_ref[...] = x

    @pl.when(l == nl - 1)
    def _():                                       # fused final LayerNorm
        o_ref[...] = layernorm(x, lnfg[...], lnfb[...])


def encode_prompt(tp, token_ids):
    # TODO(synk): CLIPTokenizer has no Pallas equivalent; token ids are provided.
    ids = token_ids[0]                                           # (SEQ,)
    x0 = jnp.take(tp["tok_emb"], ids, axis=0) + tp["pos_emb"]    # (SEQ, D)
    nl = tp["wqkv"].shape[0]

    def lw(shape):        # per-layer weight block
        return pl.BlockSpec((1,) + shape, lambda l: (l,) + (0,) * len(shape))

    def fixed(shape):     # layer-invariant block
        return pl.BlockSpec(shape, lambda l: (0,) * len(shape))

    out = pl.pallas_call(
        _clip_stack_kernel,
        out_shape=jax.ShapeDtypeStruct((SEQ, D), jnp.float32),
        grid=(nl,),
        in_specs=[
            fixed((SEQ, D)),                       # embeddings
            lw((1, D)), lw((1, D)),                # ln1 gamma/beta
            lw((D, 3 * D)), lw((1, 3 * D)),        # fused QKV weight/bias
            lw((D, D)), lw((1, D)),                # out projection
            lw((1, D)), lw((1, D)),                # ln2 gamma/beta
            lw((D, 4 * D)), lw((1, 4 * D)),        # FFN up
            lw((4 * D, D)), lw((1, D)),            # FFN down
            fixed((1, D)), fixed((1, D)),          # final LN gamma/beta
        ],
        out_specs=fixed((SEQ, D)),
        compiler_params=pltpu.CompilerParams(dimension_semantics=("arbitrary",)),
    )(x0, tp["ln1_g"], tp["ln1_b"], tp["wqkv"], tp["bqkv"], tp["wo"], tp["bo"],
      tp["ln2_g"], tp["ln2_b"], tp["w1"], tp["b1"], tp["w2"], tp["b2"],
      tp["lnf_g"], tp["lnf_b"])
    return out[None]                               # (1, SEQ, D)


# ------------------------------ parameters -----------------------------------
def init_params(key):
    keys = iter(jax.random.split(key, 64))

    def nrm(shape, scale=0.05):
        return scale * jax.random.normal(next(keys), shape, jnp.float32)

    # conv weights stored pre-reshaped as (9, Cin, Cout), tap index = kh*3 + kw
    vae = dict(
        w1=nrm((3, 3, 3, HID)).reshape(9, 3, HID),
        b1=jnp.zeros((HID,), jnp.float32),
        w2=nrm((3, 3, HID, HID)).reshape(9, HID, HID),
        b2=jnp.zeros((HID,), jnp.float32),
        w3=nrm((3, 3, HID, 2 * ZC)).reshape(9, HID, 2 * ZC),
        b3=jnp.zeros((2 * ZC,), jnp.float32),
    )

    def stack(make):
        return jnp.stack([make() for _ in range(NLAYERS)], axis=0)

    text = dict(
        tok_emb=nrm((VOCAB, D)),
        pos_emb=nrm((SEQ, D)),
        ln1_g=jnp.ones((NLAYERS, 1, D), jnp.float32),
        ln1_b=jnp.zeros((NLAYERS, 1, D), jnp.float32),
        # Q/K/V weights concatenated once at init -> one MXU pass per layer
        wqkv=stack(lambda: nrm((D, 3 * D))),
        bqkv=jnp.zeros((NLAYERS, 1, 3 * D), jnp.float32),
        wo=stack(lambda: nrm((D, D))),
        bo=jnp.zeros((NLAYERS, 1, D), jnp.float32),
        ln2_g=jnp.ones((NLAYERS, 1, D), jnp.float32),
        ln2_b=jnp.zeros((NLAYERS, 1, D), jnp.float32),
        w1=stack(lambda: nrm((D, 4 * D))),
        b1=jnp.zeros((NLAYERS, 1, 4 * D), jnp.float32),
        w2=stack(lambda: nrm((4 * D, D))),
        b2=jnp.zeros((NLAYERS, 1, D), jnp.float32),
        lnf_g=jnp.ones((1, D), jnp.float32),
        lnf_b=jnp.zeros((1, D), jnp.float32),
    )
    return dict(vae=vae, text=text)


# ------------------------------- forward --------------------------------------
def annotator_forward(params, batch, rng):
    video = batch["video"]            # (b, f, 3, H, W), float in [-1, 1]
    ref_frames = batch["ref_frames"]  # (n_ref, H, W, 3), values in [0, 255]
    token_ids = batch["token_ids"]    # (1, SEQ)

    # TODO(synk): InsightFace detection + face_align.norm_crop have no Pallas
    # equivalent; ref_frames are treated as pre-aligned crops, bboxes synthesized.
    n_ref, Hr, Wr, _ = ref_frames.shape
    bbox = jnp.tile(jnp.array([0.0, 0.0, float(Wr), float(Hr)], jnp.float32),
                    (n_ref, 1))

    k_ref, k_vid = jax.random.split(rng)

    # ref path: permute/unsqueeze cancel out; (x/255 - 0.5)*2 is fused into the
    # first conv kernel (pad value chosen so zero-padding semantics match).
    ref_images_latent = encode_frames_with_vae(
        params["vae"], ref_frames.astype(jnp.float32), 1, n_ref, k_ref,
        normalize=True)

    b, f = video.shape[0], video.shape[1]
    vid_frames = jnp.transpose(
        video.reshape((b * f,) + video.shape[2:]), (0, 2, 3, 1))   # NHWC
    latent = encode_frames_with_vae(
        params["vae"], vid_frames, b, f, k_vid, normalize=False)

    prompt_embeds = encode_prompt(params["text"], token_ids)

    return dict(
        latent=latent[0],                       # squeeze(dim=0)
        prompt_embeds=prompt_embeds[0],
        ref_images_latent=ref_images_latent[0],
        bbox=bbox,
    )


# --------------------------------- main ----------------------------------------
if __name__ == "__main__":
    key = jax.random.PRNGKey(0)
    kp, kv, kr, ks = jax.random.split(key, 4)
    params = init_params(kp)

    video = jax.random.uniform(kv, (1, 2, 3, 16, 16), jnp.float32, -1.0, 1.0)
    ref_frames = jnp.floor(
        jax.random.uniform(kr, (2, 16, 16, 3), jnp.float32, 0.0, 256.0))
    token_ids = ((jnp.arange(SEQ) * 7 + 3) % VOCAB).astype(jnp.int32)[None]

    batch = dict(video=video, ref_frames=ref_frames, token_ids=token_ids)
    out = annotator_forward(params, batch, ks)
    out = jax.tree_util.tree_map(jax.block_until_ready, out)

    assert out["latent"].shape == (ZC, 2, 2, 2)
    assert out["ref_images_latent"].shape == (ZC, 2, 2, 2)
    assert out["prompt_embeds"].shape == (SEQ, D)
    assert out["bbox"].shape == (2, 4)
    print("KERNEL_OK")
</pallas_src>

<mosaic_0001>
module attributes {stable_mosaic.version = 11 : i64} {
  func.func @kernel(%arg0: memref<4x2x9x9x3xf32, #tpu.memory_space<vmem>>, %arg1: memref<9x3x16xf32, #tpu.memory_space<vmem>>, %arg2: memref<1x16xf32, #tpu.memory_space<vmem>>, %arg3: memref<128x16xf32, #tpu.memory_space<vmem>>) attributes {dimension_semantics = [], scalar_prefetch = 0 : i64, scratch_operands = 0 : i64, tpu.core_type = #tpu.core_type<tc>} {
    %cst = arith.constant 0.000000e+00 : f32
    %0 = vector.broadcast %cst : f32 to vector<128x16xf32>
    %c0 = arith.constant 0 : index
    %c0_0 = arith.constant 0 : index
    %c0_1 = arith.constant 0 : index
    %c0_2 = arith.constant 0 : index
    %c0_3 = arith.constant 0 : index
    %1 = vector.load %arg0[%c0, %c0_0, %c0_1, %c0_2, %c0_3] : memref<4x2x9x9x3xf32, #tpu.memory_space<vmem>>, vector<1x2x8x8x3xf32>
    %2 = vector.shape_cast %1 : vector<1x2x8x8x3xf32> to vector<2x8x8x3xf32>
    %3 = vector.shape_cast %2 : vector<2x8x8x3xf32> to vector<128x3xf32>
    %cst_4 = arith.constant 0.00784313772 : f32
    %4 = vector.broadcast %cst_4 : f32 to vector<128x3xf32>
    %5 = arith.mulf %3, %4 : vector<128x3xf32>
    %cst_5 = arith.constant -1.000000e+00 : f32
    %6 = vector.broadcast %cst_5 : f32 to vector<128x3xf32>
    %7 = arith.addf %5, %6 : vector<128x3xf32>
    %c0_6 = arith.constant 0 : index
    %c0_7 = arith.constant 0 : index
    %c0_8 = arith.constant 0 : index
    %8 = vector.load %arg1[%c0_6, %c0_7, %c0_8] : memref<9x3x16xf32, #tpu.memory_space<vmem>>, vector<1x3x16xf32>
    %9 = vector.shape_cast %8 : vector<1x3x16xf32> to vector<3x16xf32>
    %cst_9 = arith.constant dense<0.000000e+00> : vector<128x16xf32>
    %10 = tpu.matmul %7, %9, %cst_9 {dimension_numbers = #tpu.dot_dimension_numbers<[1], [0], [0], [1], [0, 0, 1, 1], [], []>} : vector<128x3xf32>, vector<3x16xf32>, vector<128x16xf32> -> vector<128x16xf32>
    %11 = arith.addf %0, %10 : vector<128x16xf32>
    %c1 = arith.constant 1 : index
    %c0_10 = arith.constant 0 : index
    %c0_11 = arith.constant 0 : index
    %c0_12 = arith.constant 0 : index
    %c0_13 = arith.constant 0 : index
    %12 = vector.load %arg0[%c1, %c0_10, %c0_11, %c0_12, %c0_13] : memref<4x2x9x9x3xf32, #tpu.memory_space<vmem>>, vector<1x2x8x8x3xf32>
    %13 = vector.shape_cast %12 : vector<1x2x8x8x3xf32> to vector<2x8x8x3xf32>
    %14 = vector.shape_cast %13 : vector<2x8x8x3xf32> to vector<128x3xf32>
    %cst_14 = arith.constant 0.00784313772 : f32
    %15 = vector.broadcast %cst_14 : f32 to vector<128x3xf32>
    %16 = arith.mulf %14, %15 : vector<128x3xf32>
    %cst_15 = arith.constant -1.000000e+00 : f32
    %17 = vector.broadcast %cst_15 : f32 to vector<128x3xf32>
    %18 = arith.addf %16, %17 : vector<128x3xf32>
    %c1_16 = arith.constant 1 : index
    %c0_17 = arith.constant 0 : index
    %c0_18 = arith.constant 0 : index
    %19 = vector.load %arg1[%c1_16, %c0_17, %c0_18] : memref<9x3x16xf32, #tpu.memory_space<vmem>>, vector<1x3x16xf32>
    %20 = vector.shape_cast %19 : vector<1x3x16xf32> to vector<3x16xf32>
    %cst_19 = arith.constant dense<0.000000e+00> : vector<128x16xf32>
    %21 = tpu.matmul %18, %20, %cst_19 {dimension_numbers = #tpu.dot_dimension_numbers<[1], [0], [0], [1], [0, 0, 1, 1], [], []>} : vector<128x3xf32>, vector<3x16xf32>, vector<128x16xf32> -> vector<128x16xf32>
    %22 = arith.addf %11, %21 : vector<128x16xf32>
    %c0_20 = arith.constant 0 : index
    %c0_21 = arith.constant 0 : index
    %c0_22 = arith.constant 0 : index
    %c1_23 = arith.constant 1 : index
    %c0_24 = arith.constant 0 : index
    %23 = vector.load %arg0[%c0_20, %c0_21, %c0_22, %c1_23, %c0_24] : memref<4x2x9x9x3xf32, #tpu.memory_space<vmem>>, vector<1x2x8x8x3xf32>
    %24 = vector.shape_cast %23 : vector<1x2x8x8x3xf32> to vector<2x8x8x3xf32>
    %25 = vector.shape_cast %24 : vector<2x8x8x3xf32> to vector<128x3xf32>
    %cst_25 = arith.constant 0.00784313772 : f32
    %26 = vector.broadcast %cst_25 : f32 to vector<128x3xf32>
    %27 = arith.mulf %25, %26 : vector<128x3xf32>
    %cst_26 = arith.constant -1.000000e+00 : f32
    %28 = vector.broadcast %cst_26 : f32 to vector<128x3xf32>
    %29 = arith.addf %27, %28 : vector<128x3xf32>
    %c2 = arith.constant 2 : index
    %c0_27 = arith.constant 0 : index
    %c0_28 = arith.constant 0 : index
    %30 = vector.load %arg1[%c2, %c0_27, %c0_28] : memref<9x3x16xf32, #tpu.memory_space<vmem>>, vector<1x3x16xf32>
    %31 = vector.shape_cast %30 : vector<1x3x16xf32> to vector<3x16xf32>
    %cst_29 = arith.constant dense<0.000000e+00> : vector<128x16xf32>
    %32 = tpu.matmul %29, %31, %cst_29 {dimension_numbers = #tpu.dot_dimension_numbers<[1], [0], [0], [1], [0, 0, 1, 1], [], []>} : vector<128x3xf32>, vector<3x16xf32>, vector<128x16xf32> -> vector<128x16xf32>
    %33 = arith.addf %22, %32 : vector<128x16xf32>
    %c2_30 = arith.constant 2 : index
    %c0_31 = arith.constant 0 : index
    %c0_32 = arith.constant 0 : index
    %c0_33 = arith.constant 0 : index
    %c0_34 = arith.constant 0 : index
    %34 = vector.load %arg0[%c2_30, %c0_31, %c0_32, %c0_33, %c0_34] : memref<4x2x9x9x3xf32, #tpu.memory_space<vmem>>, vector<1x2x8x8x3xf32>
    %35 = vector.shape_cast %34 : vector<1x2x8x8x3xf32> to vector<2x8x8x3xf32>
    %36 = vector.shape_cast %35 : vector<2x8x8x3xf32> to vector<128x3xf32>
    %cst_35 = arith.constant 0.00784313772 : f32
    %37 = vector.broadcast %cst_35 : f32 to vector<128x3xf32>
    %38 = arith.mulf %36, %37 : vector<128x3xf32>
    %cst_36 = arith.constant -1.000000e+00 : f32
    %39 = vector.broadcast %cst_36 : f32 to vector<128x3xf32>
    %40 = arith.addf %38, %39 : vector<128x3xf32>
    %c3 = arith.constant 3 : index
    %c0_37 = arith.constant 0 : index
    %c0_38 = arith.constant 0 : index
    %41 = vector.load %arg1[%c3, %c0_37, %c0_38] : memref<9x3x16xf32, #tpu.memory_space<vmem>>, vector<1x3x16xf32>
    %42 = vector.shape_cast %41 : vector<1x3x16xf32> to vector<3x16xf32>
    %cst_39 = arith.constant dense<0.000000e+00> : vector<128x16xf32>
    %43 = tpu.matmul %40, %42, %cst_39 {dimension_numbers = #tpu.dot_dimension_numbers<[1], [0], [0], [1], [0, 0, 1, 1], [], []>} : vector<128x3xf32>, vector<3x16xf32>, vector<128x16xf32> -> vector<128x16xf32>
    %44 = arith.addf %33, %43 : vector<128x16xf32>
    %c3_40 = arith.constant 3 : index
    %c0_41 = arith.constant 0 : index
    %c0_42 = arith.constant 0 : index
    %c0_43 = arith.constant 0 : index
    %c0_44 = arith.constant 0 : index
    %45 = vector.load %arg0[%c3_40, %c0_41, %c0_42, %c0_43, %c0_44] : memref<4x2x9x9x3xf32, #tpu.memory_space<vmem>>, vector<1x2x8x8x3xf32>
    %46 = vector.shape_cast %45 : vector<1x2x8x8x3xf32> to vector<2x8x8x3xf32>
    %47 = vector.shape_cast %46 : vector<2x8x8x3xf32> to vector<128x3xf32>
    %cst_45 = arith.constant 0.00784313772 : f32
    %48 = vector.broadcast %cst_45 : f32 to vector<128x3xf32>
    %49 = arith.mulf %47, %48 : vector<128x3xf32>
    %cst_46 = arith.constant -1.000000e+00 : f32
    %50 = vector.broadcast %cst_46 : f32 to vector<128x3xf32>
    %51 = arith.addf %49, %50 : vector<128x3xf32>
    %c4 = arith.constant 4 : index
    %c0_47 = arith.constant 0 : index
    %c0_48 = arith.constant 0 : index
    %52 = vector.load %arg1[%c4, %c0_47, %c0_48] : memref<9x3x16xf32, #tpu.memory_space<vmem>>, vector<1x3x16xf32>
    %53 = vector.shape_cast %52 : vector<1x3x16xf32> to vector<3x16xf32>
    %cst_49 = arith.constant dense<0.000000e+00> : vector<128x16xf32>
    %54 = tpu.matmul %51, %53, %cst_49 {dimension_numbers = #tpu.dot_dimension_numbers<[1], [0], [0], [1], [0, 0, 1, 1], [], []>} : vector<128x3xf32>, vector<3x16xf32>, vector<128x16xf32> -> vector<128x16xf32>
    %55 = arith.addf %44, %54 : vector<128x16xf32>
    %c2_50 = arith.constant 2 : index
    %c0_51 = arith.constant 0 : index
    %c0_52 = arith.constant 0 : index
    %c1_53 = arith.constant 1 : index
    %c0_54 = arith.constant 0 : index
    %56 = vector.load %arg0[%c2_50, %c0_51, %c0_52, %c1_53, %c0_54] : memref<4x2x9x9x3xf32, #tpu.memory_space<vmem>>, vector<1x2x8x8x3xf32>
    %57 = vector.shape_cast %56 : vector<1x2x8x8x3xf32> to vector<2x8x8x3xf32>
    %58 = vector.shape_cast %57 : vector<2x8x8x3xf32> to vector<128x3xf32>
    %cst_55 = arith.constant 0.00784313772 : f32
    %59 = vector.broadcast %cst_55 : f32 to vector<128x3xf32>
    %60 = arith.mulf %58, %59 : vector<128x3xf32>
    %cst_56 = arith.constant -1.000000e+00 : f32
    %61 = vector.broadcast %cst_56 : f32 to vector<128x3xf32>
    %62 = arith.addf %60, %61 : vector<128x3xf32>
    %c5 = arith.constant 5 : index
    %c0_57 = arith.constant 0 : index
    %c0_58 = arith.constant 0 : index
    %63 = vector.load %arg1[%c5, %c0_57, %c0_58] : memref<9x3x16xf32, #tpu.memory_space<vmem>>, vector<1x3x16xf32>
    %64 = vector.shape_cast %63 : vector<1x3x16xf32> to vector<3x16xf32>
    %cst_59 = arith.constant dense<0.000000e+00> : vector<128x16xf32>
    %65 = tpu.matmul %62, %64, %cst_59 {dimension_numbers = #tpu.dot_dimension_numbers<[1], [0], [0], [1], [0, 0, 1, 1], [], []>} : vector<128x3xf32>, vector<3x16xf32>, vector<128x16xf32> -> vector<128x16xf32>
    %66 = arith.addf %55, %65 : vector<128x16xf32>
    %c0_60 = arith.constant 0 : index
    %c0_61 = arith.constant 0 : index
    %c1_62 = arith.constant 1 : index
    %c0_63 = arith.constant 0 : index
    %c0_64 = arith.constant 0 : index
    %67 = vector.load %arg0[%c0_60, %c0_61, %c1_62, %c0_63, %c0_64] : memref<4x2x9x9x3xf32, #tpu.memory_space<vmem>>, vector<1x2x8x8x3xf32>
    %68 = vector.shape_cast %67 : vector<1x2x8x8x3xf32> to vector<2x8x8x3xf32>
    %69 = vector.shape_cast %68 : vector<2x8x8x3xf32> to vector<128x3xf32>
    %cst_65 = arith.constant 0.00784313772 : f32
    %70 = vector.broadcast %cst_65 : f32 to vector<128x3xf32>
    %71 = arith.mulf %69, %70 : vector<128x3xf32>
    %cst_66 = arith.constant -1.000000e+00 : f32
    %72 = vector.broadcast %cst_66 : f32 to vector<128x3xf32>
    %73 = arith.addf %71, %72 : vector<128x3xf32>
    %c6 = arith.constant 6 : index
    %c0_67 = arith.constant 0 : index
    %c0_68 = arith.constant 0 : index
    %74 = vector.load %arg1[%c6, %c0_67, %c0_68] : memref<9x3x16xf32, #tpu.memory_space<vmem>>, vector<1x3x16xf32>
    %75 = vector.shape_cast %74 : vector<1x3x16xf32> to vector<3x16xf32>
    %cst_69 = arith.constant dense<0.000000e+00> : vector<128x16xf32>
    %76 = tpu.matmul %73, %75, %cst_69 {dimension_numbers = #tpu.dot_dimension_numbers<[1], [0], [0], [1], [0, 0, 1, 1], [], []>} : vector<128x3xf32>, vector<3x16xf32>, vector<128x16xf32> -> vector<128x16xf32>
    %77 = arith.addf %66, %76 : vector<128x16xf32>
    %c1_70 = arith.constant 1 : index
    %c0_71 = arith.constant 0 : index
    %c1_72 = arith.constant 1 : index
    %c0_73 = arith.constant 0 : index
    %c0_74 = arith.constant 0 : index
    %78 = vector.load %arg0[%c1_70, %c0_71, %c1_72, %c0_73, %c0_74] : memref<4x2x9x9x3xf32, #tpu.memory_space<vmem>>, vector<1x2x8x8x3xf32>
    %79 = vector.shape_cast %78 : vector<1x2x8x8x3xf32> to vector<2x8x8x3xf32>
    %80 = vector.shape_cast %79 : vector<2x8x8x3xf32> to vector<128x3xf32>
    %cst_75 = arith.constant 0.00784313772 : f32
    %81 = vector.broadcast %cst_75 : f32 to vector<128x3xf32>
    %82 = arith.mulf %80, %81 : vector<128x3xf32>
    %cst_76 = arith.constant -1.000000e+00 : f32
    %83 = vector.broadcast %cst_76 : f32 to vector<128x3xf32>
    %84 = arith.addf %82, %83 : vector<128x3xf32>
    %c7 = arith.constant 7 : index
    %c0_77 = arith.constant 0 : index
    %c0_78 = arith.constant 0 : index
    %85 = vector.load %arg1[%c7, %c0_77, %c0_78] : memref<9x3x16xf32, #tpu.memory_space<vmem>>, vector<1x3x16xf32>
    %86 = vector.shape_cast %85 : vector<1x3x16xf32> to vector<3x16xf32>
    %cst_79 = arith.constant dense<0.000000e+00> : vector<128x16xf32>
    %87 = tpu.matmul %84, %86, %cst_79 {dimension_numbers = #tpu.dot_dimension_numbers<[1], [0], [0], [1], [0, 0, 1, 1], [], []>} : vector<128x3xf32>, vector<3x16xf32>, vector<128x16xf32> -> vector<128x16xf32>
    %88 = arith.addf %77, %87 : vector<128x16xf32>
    %c0_80 = arith.constant 0 : index
    %c0_81 = arith.constant 0 : index
    %c1_82 = arith.constant 1 : index
    %c1_83 = arith.constant 1 : index
    %c0_84 = arith.constant 0 : index
    %89 = vector.load %arg0[%c0_80, %c0_81, %c1_82, %c1_83, %c0_84] : memref<4x2x9x9x3xf32, #tpu.memory_space<vmem>>, vector<1x2x8x8x3xf32>
    %90 = vector.shape_cast %89 : vector<1x2x8x8x3xf32> to vector<2x8x8x3xf32>
    %91 = vector.shape_cast %90 : vector<2x8x8x3xf32> to vector<128x3xf32>
    %cst_85 = arith.constant 0.00784313772 : f32
    %92 = vector.broadcast %cst_85 : f32 to vector<128x3xf32>
    %93 = arith.mulf %91, %92 : vector<128x3xf32>
    %cst_86 = arith.constant -1.000000e+00 : f32
    %94 = vector.broadcast %cst_86 : f32 to vector<128x3xf32>
    %95 = arith.addf %93, %94 : vector<128x3xf32>
    %c8 = arith.constant 8 : index
    %c0_87 = arith.constant 0 : index
    %c0_88 = arith.constant 0 : index
    %96 = vector.load %arg1[%c8, %c0_87, %c0_88] : memref<9x3x16xf32, #tpu.memory_space<vmem>>, vector<1x3x16xf32>
    %97 = vector.shape_cast %96 : vector<1x3x16xf32> to vector<3x16xf32>
    %cst_89 = arith.constant dense<0.000000e+00> : vector<128x16xf32>
    %98 = tpu.matmul %95, %97, %cst_89 {dimension_numbers = #tpu.dot_dimension_numbers<[1], [0], [0], [1], [0, 0, 1, 1], [], []>} : vector<128x3xf32>, vector<3x16xf32>, vector<128x16xf32> -> vector<128x16xf32>
    %99 = arith.addf %88, %98 : vector<128x16xf32>
    %c0_90 = arith.constant 0 : index
    %c0_91 = arith.constant 0 : index
    %100 = vector.load %arg2[%c0_90, %c0_91] : memref<1x16xf32, #tpu.memory_space<vmem>>, vector<1x16xf32>
    %101 = vector.broadcast %100 : vector<1x16xf32> to vector<128x16xf32>
    %102 = arith.addf %99, %101 : vector<128x16xf32>
    %cst_92 = arith.constant 0.000000e+00 : f32
    %103 = vector.broadcast %cst_92 : f32 to vector<128x16xf32>
    %104 = arith.subf %103, %102 : vector<128x16xf32>
    %105 = math.exp %104 : vector<128x16xf32>
    %cst_93 = arith.constant 1.000000e+00 : f32
    %106 = vector.broadcast %cst_93 : f32 to vector<128x16xf32>
    %107 = arith.addf %106, %105 : vector<128x16xf32>
    %108 = tpu.reciprocal %107 {approx = true} : vector<128x16xf32> -> vector<128x16xf32>
    %109 = arith.mulf %102, %108 : vector<128x16xf32>
    %c0_94 = arith.constant 0 : index
    %c0_95 = arith.constant 0 : index
    %110 = vector.load %arg3[%c0_94, %c0_95] : memref<128x16xf32, #tpu.memory_space<vmem>>, vector<128x16xf32>
    tpu.vector_store %arg3[%c0_94, %c0_95], %109 {strides = array<i32>} : memref<128x16xf32, #tpu.memory_space<vmem>>, vector<128x16xf32>,
    return
  }
}

</mosaic_0001>

<llo_original>
// kernel: tpu_custom_call.1
$region0: #{tpu_custom_call.1}
  #allocation0 [shape = 'u32[]', space=smem, size = 0x4, offset = 0x4, fixed_abs, tag = 'smem constant byte address 0x4 - core index']
  #allocation1 [shape = 'u32[72,128]{1,0:T(1,128)}', space=vmem, size = 0x9000, scoped, tag = 'internal scratch']
  %s0 = inlined_call_operand.vmem [shape: f32[4,2,9,9,3], index: 0, kind: input, shape index: {}]
  %s1 = inlined_call_operand.vmem [shape: f32[9,3,16], index: 1, kind: input, shape index: {}]
  %s2 = inlined_call_operand.vmem [shape: f32[1,16], index: 2, kind: input, shape index: {}]
  %s3 = inlined_call_operand.vmem [shape: f32[128,16], index: 3, kind: output, shape index: {}]
  %s4 = sld [smem:[#allocation0]]
  $region22: #{tpu_custom_call.1} parent=0
    _
  %s6 = ssub.s32 1, %s4
  %s7 = scalar_select 0, %s6, %s4
  // Predicated region
  $region2: #{tpu_custom_call.1} parent=0 // pred_check
    _
  $region3: #{tpu_custom_call.1} parent=0 // pred_check_branch
    %9 = sbr.rel (0) target = $region5
  $region4: #{tpu_custom_call.1} parent=0 // pred_region
    _
  $region5: #{tpu_custom_call.1} parent=0 // pred_fallthru
    _
  // Predicated region
  $region6: #{tpu_custom_call.1} parent=0 // pred_check
    _
  $region7: #{tpu_custom_call.1} parent=0 // pred_check_branch
    %11 = sbr.rel (0) target = $region9
  $region8: #{tpu_custom_call.1} parent=0 // pred_region
    _
  $region9: #{tpu_custom_call.1} parent=0 // pred_fallthru
    _
  // Predicated region
  $region10: #{tpu_custom_call.1} parent=0 // pred_check
    _
  $region11: #{tpu_custom_call.1} parent=0 // pred_check_branch
    %13 = sbr.rel (0) target = $region13
  $region12: #{tpu_custom_call.1} parent=0 // pred_region
    _
  $region13: #{tpu_custom_call.1} parent=0 // pred_fallthru
    _
  %v14 = vld [vmem:[%s0] sm:$0xff]
  %v15 = vld [vmem:[%s0 + $0x10] sm:$0xff]
  %v16 = vld [vmem:[%s0 + $0x20] sm:$0xff]
  %v17 = vld [vmem:[%s0 + $0x30] sm:$0xff]
  %v18 = vld [vmem:[%s0 + $0x40] sm:$0xff]
  %v19 = vld [vmem:[%s0 + $0x50] sm:$0xff]
  %v20 = vld [vmem:[%s0 + $0x60] sm:$0xff]
  %v21 = vld [vmem:[%s0 + $0x70] sm:$0xff]
  %v22 = vld [vmem:[%s0 + $0x90] sm:$0xff]
  %v23 = vld [vmem:[%s0 + $0xa0] sm:$0xff]
  %v24 = vld [vmem:[%s0 + $0xb0] sm:$0xff]
  %v25 = vld [vmem:[%s0 + $0xc0] sm:$0xff]
  %v26 = vld [vmem:[%s0 + $0xd0] sm:$0xff]
  %v27 = vld [vmem:[%s0 + $0xe0] sm:$0xff]
  %v28 = vld [vmem:[%s0 + $0xf0] sm:$0xff]
  %v29 = vld [vmem:[%s0 + $0x100] sm:$0xff]
  %v30 = vmul.f32 %v14, 0.007843138
  %v31 = vmul.f32 %v15, 0.007843138
  %v32 = vmul.f32 %v16, 0.007843138
  %v33 = vmul.f32 %v17, 0.007843138
  %v34 = vmul.f32 %v18, 0.007843138
  %v35 = vmul.f32 %v19, 0.007843138
  %v36 = vmul.f32 %v20, 0.007843138
  %v37 = vmul.f32 %v21, 0.007843138
  %v38 = vmul.f32 %v22, 0.007843138
  %v39 = vmul.f32 %v23, 0.007843138
  %v40 = vmul.f32 %v24, 0.007843138
  %v41 = vmul.f32 %v25, 0.007843138
  %v42 = vmul.f32 %v26, 0.007843138
  %v43 = vmul.f32 %v27, 0.007843138
  %v44 = vmul.f32 %v28, 0.007843138
  %v45 = vmul.f32 %v29, 0.007843138
  %v46 = vadd.f32 %v30, -1.0
  %v47 = vadd.f32 %v31, -1.0
  %v48 = vadd.f32 %v32, -1.0
  %v49 = vadd.f32 %v33, -1.0
  %v50 = vadd.f32 %v34, -1.0
  %v51 = vadd.f32 %v35, -1.0
  %v52 = vadd.f32 %v36, -1.0
  %v53 = vadd.f32 %v37, -1.0
  %v54 = vadd.f32 %v38, -1.0
  %v55 = vadd.f32 %v39, -1.0
  %v56 = vadd.f32 %v40, -1.0
  %v57 = vadd.f32 %v41, -1.0
  %v58 = vadd.f32 %v42, -1.0
  %v59 = vadd.f32 %v43, -1.0
  %v60 = vadd.f32 %v44, -1.0
  %v61 = vadd.f32 %v45, -1.0
  %v62 = vld [vmem:[%s1] sm:$0x7]
  %s63 = scalar_lea.vmem %s0, 288
  %v64 = vld [vmem:[%s63] sm:$0xff]
  %v65 = vld [vmem:[%s63 + $0x10] sm:$0xff]
  %v66 = vld [vmem:[%s63 + $0x20] sm:$0xff]
  %v67 = vld [vmem:[%s63 + $0x30] sm:$0xff]
  %v68 = vld [vmem:[%s63 + $0x40] sm:$0xff]
  %v69 = vld [vmem:[%s63 + $0x50] sm:$0xff]
  %v70 = vld [vmem:[%s63 + $0x60] sm:$0xff]
  %v71 = vld [vmem:[%s63 + $0x70] sm:$0xff]
  %v72 = vld [vmem:[%s63 + $0x90] sm:$0xff]
  %v73 = vld [vmem:[%s63 + $0xa0] sm:$0xff]
  %v74 = vld [vmem:[%s63 + $0xb0] sm:$0xff]
  %v75 = vld [vmem:[%s63 + $0xc0] sm:$0xff]
  %v76 = vld [vmem:[%s63 + $0xd0] sm:$0xff]
  %v77 = vld [vmem:[%s63 + $0xe0] sm:$0xff]
  %v78 = vld [vmem:[%s63 + $0xf0] sm:$0xff]
  %v79 = vld [vmem:[%s63 + $0x100] sm:$0xff]
  %v80 = vmul.f32 %v64, 0.007843138
  %v81 = vmul.f32 %v65, 0.007843138
  %v82 = vmul.f32 %v66, 0.007843138
  %v83 = vmul.f32 %v67, 0.007843138
  %v84 = vmul.f32 %v68, 0.007843138
  %v85 = vmul.f32 %v69, 0.007843138
  %v86 = vmul.f32 %v70, 0.007843138
  %v87 = vmul.f32 %v71, 0.007843138
  %v88 = vmul.f32 %v72, 0.007843138
  %v89 = vmul.f32 %v73, 0.007843138
  %v90 = vmul.f32 %v74, 0.007843138
  %v91 = vmul.f32 %v75, 0.007843138
  %v92 = vmul.f32 %v76, 0.007843138
  %v93 = vmul.f32 %v77, 0.007843138
  %v94 = vmul.f32 %v78, 0.007843138
  %v95 = vmul.f32 %v79, 0.007843138
  %v96 = vadd.f32 %v80, -1.0
  %v97 = vadd.f32 %v81, -1.0
  %v98 = vadd.f32 %v82, -1.0
  %v99 = vadd.f32 %v83, -1.0
  %v100 = vadd.f32 %v84, -1.0
  %v101 = vadd.f32 %v85, -1.0
  %v102 = vadd.f32 %v86, -1.0
  %v103 = vadd.f32 %v87, -1.0
  %v104 = vadd.f32 %v88, -1.0
  %v105 = vadd.f32 %v89, -1.0
  %v106 = vadd.f32 %v90, -1.0
  %v107 = vadd.f32 %v91, -1.0
  %v108 = vadd.f32 %v92, -1.0
  %v109 = vadd.f32 %v93, -1.0
  %v110 = vadd.f32 %v94, -1.0
  %v111 = vadd.f32 %v95, -1.0
  %s112 = scalar_lea.vmem %s1, 4
  %v113 = vld [vmem:[%s112] sm:$0x7]
  %vm114 = vcmask 23552
  %v116 = vsel %vm114, %v96, 0
  %v119 = vsel %vm114, %v97, 0
  %v122 = vsel %vm114, %v98, 0
  %v125 = vsel %vm114, %v99, 0
  %v128 = vsel %vm114, %v100, 0
  %v131 = vsel %vm114, %v101, 0
  %v134 = vsel %vm114, %v102, 0
  %v137 = vsel %vm114, %v103, 0
  %v140 = vsel %vm114, %v104, 0
  %v143 = vsel %vm114, %v105, 0
  %v146 = vsel %vm114, %v106, 0
  %v149 = vsel %vm114, %v107, 0
  %v152 = vsel %vm114, %v108, 0
  %v155 = vsel %vm114, %v109, 0
  %v158 = vsel %vm114, %v110, 0
  %v161 = vsel %vm114, %v111, 0
  %vm163 = vcmask 1042432
  %v165 = vsel %vm163, %v113, 0
  %167 = vmatpush.msra.mxu0 0.0
  %168 = vmatpush.msra.mxu0 0.0
  %169 = vmatpush.msra.mxu0 0.0
  %170 = vmatpush.msra.mxu0 0.0
  %171 = vmatpush.msra.mxu0 0.0
  %172 = vmatpush.msra.mxu0 0.0
  %173 = vmatpush.msra.mxu0 0.0
  %174 = vmatpush.msra.mxu0 0.0
  %175 = vmatpush.msra.mxu0 0.0
  %176 = vmatpush.msra.mxu0 0.0
  %177 = vmatpush.msra.mxu0 0.0
  %178 = vmatpush.msra.mxu0 0.0
  %179 = vmatpush.msra.mxu0 0.0
  %180 = vmatpush.msra.mxu0 0.0
  %181 = vmatpush.msra.mxu0 0.0
  %182 = vmatpush.msra.mxu0 %v165
  %183 = vmatmul.f32.gmra.mxu0 %v116
  %v184 = vpop.f32.mrf.mxu0
  %v185 = vadd.f32 0.0, %v184
  %186 = vmatmul.f32.gmra.mxu0 %v119
  %v187 = vpop.f32.mrf.mxu0
  %v188 = vadd.f32 0.0, %v187
  %189 = vmatmul.f32.gmra.mxu0 %v122
  %v190 = vpop.f32.mrf.mxu0
  %v191 = vadd.f32 0.0, %v190
  %192 = vmatmul.f32.gmra.mxu0 %v125
  %v193 = vpop.f32.mrf.mxu0
  %v194 = vadd.f32 0.0, %v193
  %195 = vmatmul.f32.gmra.mxu0 %v128
  %v196 = vpop.f32.mrf.mxu0
  %v197 = vadd.f32 0.0, %v196
  %198 = vmatmul.f32.gmra.mxu0 %v131
  %v199 = vpop.f32.mrf.mxu0
  %v200 = vadd.f32 0.0, %v199
  %201 = vmatmul.f32.gmra.mxu0 %v134
  %v202 = vpop.f32.mrf.mxu0
  %v203 = vadd.f32 0.0, %v202
  %204 = vmatmul.f32.gmra.mxu0 %v137
  %v205 = vpop.f32.mrf.mxu0
  %v206 = vadd.f32 0.0, %v205
  %207 = vmatmul.f32.gmra.mxu0 %v140
  %v208 = vpop.f32.mrf.mxu0
  %v209 = vadd.f32 0.0, %v208
  %210 = vmatmul.f32.gmra.mxu0 %v143
  %v211 = vpop.f32.mrf.mxu0
  %v212 = vadd.f32 0.0, %v211
  %213 = vmatmul.f32.gmra.mxu0 %v146
  %v214 = vpop.f32.mrf.mxu0
  %v215 = vadd.f32 0.0, %v214
  %216 = vmatmul.f32.gmra.mxu0 %v149
  %v217 = vpop.f32.mrf.mxu0
  %v218 = vadd.f32 0.0, %v217
  %219 = vmatmul.f32.gmra.mxu0 %v152
  %v220 = vpop.f32.mrf.mxu0
  %v221 = vadd.f32 0.0, %v220
  %222 = vmatmul.f32.gmra.mxu0 %v155
  %v223 = vpop.f32.mrf.mxu0
  %v224 = vadd.f32 0.0, %v223
  %225 = vmatmul.f32.gmra.mxu0 %v158
  %v226 = vpop.f32.mrf.mxu0
  %v227 = vadd.f32 0.0, %v226
  %228 = vmatmul.f32.gmra.mxu0 %v161
  %v229 = vpop.f32.mrf.mxu0
  %v230 = vadd.f32 0.0, %v229
  %231 = vdwg.mxu0
  %v233 = vsel %vm114, %v46, 0
  %v236 = vsel %vm114, %v47, 0
  %v239 = vsel %vm114, %v48, 0
  %v242 = vsel %vm114, %v49, 0
  %v245 = vsel %vm114, %v50, 0
  %v248 = vsel %vm114, %v51, 0
  %v251 = vsel %vm114, %v52, 0
  %v254 = vsel %vm114, %v53, 0
  %v257 = vsel %vm114, %v54, 0
  %v260 = vsel %vm114, %v55, 0
  %v263 = vsel %vm114, %v56, 0
  %v266 = vsel %vm114, %v57, 0
  %v269 = vsel %vm114, %v58, 0
  %v272 = vsel %vm114, %v59, 0
  %v275 = vsel %vm114, %v60, 0
  %v278 = vsel %vm114, %v61, 0
  %v281 = vsel %vm163, %v62, 0
  %283 = vmatpush.msra.mxu0 0.0
  %284 = vmatpush.msra.mxu0 0.0
  %285 = vmatpush.msra.mxu0 0.0
  %286 = vmatpush.msra.mxu0 0.0
  %287 = vmatpush.msra.mxu0 0.0
  %288 = vmatpush.msra.mxu0 0.0
  %289 = vmatpush.msra.mxu0 0.0
  %290 = vmatpush.msra.mxu0 0.0
  %291 = vmatpush.msra.mxu0 0.0
  %292 = vmatpush.msra.mxu0 0.0
  %293 = vmatpush.msra.mxu0 0.0
  %294 = vmatpush.msra.mxu0 0.0
  %295 = vmatpush.msra.mxu0 0.0
  %296 = vmatpush.msra.mxu0 0.0
  %297 = vmatpush.msra.mxu0 0.0
  %298 = vmatpush.msra.mxu0 %v281
  %299 = vmatmul.f32.gmra.mxu0 %v233
  %v300 = vpop.f32.mrf.mxu0
  %v301 = vadd.f32 %v185, %v300
  %302 = vmatmul.f32.gmra.mxu0 %v236
  %v303 = vpop.f32.mrf.mxu0
  %v304 = vadd.f32 %v188, %v303
  %305 = vmatmul.f32.gmra.mxu0 %v239
  %v306 = vpop.f32.mrf.mxu0
  %v307 = vadd.f32 %v191, %v306
  %308 = vmatmul.f32.gmra.mxu0 %v242
  %v309 = vpop.f32.mrf.mxu0
  %v310 = vadd.f32 %v194, %v309
  %311 = vmatmul.f32.gmra.mxu0 %v245
  %v312 = vpop.f32.mrf.mxu0
  %v313 = vadd.f32 %v197, %v312
  %314 = vmatmul.f32.gmra.mxu0 %v248
  %v315 = vpop.f32.mrf.mxu0
  %v316 = vadd.f32 %v200, %v315
  %317 = vmatmul.f32.gmra.mxu0 %v251
  %v318 = vpop.f32.mrf.mxu0
  %v319 = vadd.f32 %v203, %v318
  %320 = vmatmul.f32.gmra.mxu0 %v254
  %v321 = vpop.f32.mrf.mxu0
  %v322 = vadd.f32 %v206, %v321
  %323 = vmatmul.f32.gmra.mxu0 %v257
  %v324 = vpop.f32.mrf.mxu0
  %v325 = vadd.f32 %v209, %v324
  %326 = vmatmul.f32.gmra.mxu0 %v260
  %v327 = vpop.f32.mrf.mxu0
  %v328 = vadd.f32 %v212, %v327
  %329 = vmatmul.f32.gmra.mxu0 %v263
  %v330 = vpop.f32.mrf.mxu0
  %v331 = vadd.f32 %v215, %v330
  %332 = vmatmul.f32.gmra.mxu0 %v266
  %v333 = vpop.f32.mrf.mxu0
  %v334 = vadd.f32 %v218, %v333
  %335 = vmatmul.f32.gmra.mxu0 %v269
  %v336 = vpop.f32.mrf.mxu0
  %v337 = vadd.f32 %v221, %v336
  %338 = vmatmul.f32.gmra.mxu0 %v272
  %v339 = vpop.f32.mrf.mxu0
  %v340 = vadd.f32 %v224, %v339
  %341 = vmatmul.f32.gmra.mxu0 %v275
  %v342 = vpop.f32.mrf.mxu0
  %v343 = vadd.f32 %v227, %v342
  %344 = vmatmul.f32.gmra.mxu0 %v278
  %v345 = vpop.f32.mrf.mxu0
  %v346 = vadd.f32 %v230, %v345
  %347 = vdwg.mxu0
  %v348 = vld [vmem:[%s0 + $0x1] sm:$0xff]
  %v349 = vld [vmem:[%s0 + $0x11] sm:$0xff]
  %v350 = vld [vmem:[%s0 + $0x21] sm:$0xff]
  %v351 = vld [vmem:[%s0 + $0x31] sm:$0xff]
  %v352 = vld [vmem:[%s0 + $0x41] sm:$0xff]
  %v353 = vld [vmem:[%s0 + $0x51] sm:$0xff]
  %v354 = vld [vmem:[%s0 + $0x61] sm:$0xff]
  %v355 = vld [vmem:[%s0 + $0x71] sm:$0xff]
  %v356 = vld [vmem:[%s0 + $0x91] sm:$0xff]
  %v357 = vld [vmem:[%s0 + $0xa1] sm:$0xff]
  %v358 = vld [vmem:[%s0 + $0xb1] sm:$0xff]
  %v359 = vld [vmem:[%s0 + $0xc1] sm:$0xff]
  %v360 = vld [vmem:[%s0 + $0xd1] sm:$0xff]
  %v361 = vld [vmem:[%s0 + $0xe1] sm:$0xff]
  %v362 = vld [vmem:[%s0 + $0xf1] sm:$0xff]
  %v363 = vld [vmem:[%s0 + $0x101] sm:$0xff]
  %v364 = vmul.f32 %v348, 0.007843138
  %v365 = vmul.f32 %v349, 0.007843138
  %v366 = vmul.f32 %v350, 0.007843138
  %v367 = vmul.f32 %v351, 0.007843138
  %v368 = vmul.f32 %v352, 0.007843138
  %v369 = vmul.f32 %v353, 0.007843138
  %v370 = vmul.f32 %v354, 0.007843138
  %v371 = vmul.f32 %v355, 0.007843138
  %v372 = vmul.f32 %v356, 0.007843138
  %v373 = vmul.f32 %v357, 0.007843138
  %v374 = vmul.f32 %v358, 0.007843138
  %v375 = vmul.f32 %v359, 0.007843138
  %v376 = vmul.f32 %v360, 0.007843138
  %v377 = vmul.f32 %v361, 0.007843138
  %v378 = vmul.f32 %v362, 0.007843138
  %v379 = vmul.f32 %v363, 0.007843138
  %v380 = vadd.f32 %v364, -1.0
  %v381 = vadd.f32 %v365, -1.0
  %v382 = vadd.f32 %v366, -1.0
  %v383 = vadd.f32 %v367, -1.0
  %v384 = vadd.f32 %v368, -1.0
  %v385 = vadd.f32 %v369, -1.0
  %v386 = vadd.f32 %v370, -1.0
  %v387 = vadd.f32 %v371, -1.0
  %v388 = vadd.f32 %v372, -1.0
  %v389 = vadd.f32 %v373, -1.0
  %v390 = vadd.f32 %v374, -1.0
  %v391 = vadd.f32 %v375, -1.0
  %v392 = vadd.f32 %v376, -1.0
  %v393 = vadd.f32 %v377, -1.0
  %v394 = vadd.f32 %v378, -1.0
  %v395 = vadd.f32 %v379, -1.0
  %s396 = scalar_lea.vmem %s1, 8
  %v397 = vld [vmem:[%s396] sm:$0x7]
  %v399 = vsel %vm114, %v380, 0
  %v402 = vsel %vm114, %v381, 0
  %v405 = vsel %vm114, %v382, 0
  %v408 = vsel %vm114, %v383, 0
  %v411 = vsel %vm114, %v384, 0
  %v414 = vsel %vm114, %v385, 0
  %v417 = vsel %vm114, %v386, 0
  %v420 = vsel %vm114, %v387, 0
  %v423 = vsel %vm114, %v388, 0
  %v426 = vsel %vm114, %v389, 0
  %v429 = vsel %vm114, %v390, 0
  %v432 = vsel %vm114, %v391, 0
  %v435 = vsel %vm114, %v392, 0
  %v438 = vsel %vm114, %v393, 0
  %v441 = vsel %vm114, %v394, 0
  %v444 = vsel %vm114, %v395, 0
  %v447 = vsel %vm163, %v397, 0
  %449 = vmatpush.msra.mxu0 0.0
  %450 = vmatpush.msra.mxu0 0.0
  %451 = vmatpush.msra.mxu0 0.0
  %452 = vmatpush.msra.mxu0 0.0
  %453 = vmatpush.msra.mxu0 0.0
  %454 = vmatpush.msra.mxu0 0.0
  %455 = vmatpush.msra.mxu0 0.0
  %456 = vmatpush.msra.mxu0 0.0
  %457 = vmatpush.msra.mxu0 0.0
  %458 = vmatpush.msra.mxu0 0.0
  %459 = vmatpush.msra.mxu0 0.0
  %460 = vmatpush.msra.mxu0 0.0
  %461 = vmatpush.msra.mxu0 0.0
  %462 = vmatpush.msra.mxu0 0.0
  %463 = vmatpush.msra.mxu0 0.0
  %464 = vmatpush.msra.mxu0 %v447
  %465 = vmatmul.f32.gmra.mxu0 %v399
  %v466 = vpop.f32.mrf.mxu0
  %v467 = vadd.f32 0.0, %v466
  %468 = vmatmul.f32.gmra.mxu0 %v402
  %v469 = vpop.f32.mrf.mxu0
  %v470 = vadd.f32 0.0, %v469
  %471 = vmatmul.f32.gmra.mxu0 %v405
  %v472 = vpop.f32.mrf.mxu0
  %v473 = vadd.f32 0.0, %v472
  %474 = vmatmul.f32.gmra.mxu0 %v408
  %v475 = vpop.f32.mrf.mxu0
  %v476 = vadd.f32 0.0, %v475
  %477 = vmatmul.f32.gmra.mxu0 %v411
  %v478 = vpop.f32.mrf.mxu0
  %v479 = vadd.f32 0.0, %v478
  %480 = vmatmul.f32.gmra.mxu0 %v414
  %v481 = vpop.f32.mrf.mxu0
  %v482 = vadd.f32 0.0, %v481
  %483 = vmatmul.f32.gmra.mxu0 %v417
  %v484 = vpop.f32.mrf.mxu0
  %v485 = vadd.f32 0.0, %v484
  %486 = vmatmul.f32.gmra.mxu0 %v420
  %v487 = vpop.f32.mrf.mxu0
  %v488 = vadd.f32 0.0, %v487
  %489 = vmatmul.f32.gmra.mxu0 %v423
  %v490 = vpop.f32.mrf.mxu0
  %v491 = vadd.f32 0.0, %v490
  %492 = vmatmul.f32.gmra.mxu0 %v426
  %v493 = vpop.f32.mrf.mxu0
  %v494 = vadd.f32 0.0, %v493
  %495 = vmatmul.f32.gmra.mxu0 %v429
  %v496 = vpop.f32.mrf.mxu0
  %v497 = vadd.f32 0.0, %v496
  %498 = vmatmul.f32.gmra.mxu0 %v432
  %v499 = vpop.f32.mrf.mxu0
  %v500 = vadd.f32 0.0, %v499
  %501 = vmatmul.f32.gmra.mxu0 %v435
  %v502 = vpop.f32.mrf.mxu0
  %v503 = vadd.f32 0.0, %v502
  %504 = vmatmul.f32.gmra.mxu0 %v438
  %v505 = vpop.f32.mrf.mxu0
  %v506 = vadd.f32 0.0, %v505
  %507 = vmatmul.f32.gmra.mxu0 %v441
  %v508 = vpop.f32.mrf.mxu0
  %v509 = vadd.f32 0.0, %v508
  %510 = vmatmul.f32.gmra.mxu0 %v444
  %v511 = vpop.f32.mrf.mxu0
  %v512 = vadd.f32 0.0, %v511
  %513 = vdwg.mxu0
  %v514 = vadd.f32 %v301, %v467
  %v515 = vadd.f32 %v304, %v470
  %v516 = vadd.f32 %v307, %v473
  %v517 = vadd.f32 %v310, %v476
  %v518 = vadd.f32 %v313, %v479
  %v519 = vadd.f32 %v316, %v482
  %v520 = vadd.f32 %v319, %v485
  %v521 = vadd.f32 %v322, %v488
  %v522 = vadd.f32 %v325, %v491
  %v523 = vadd.f32 %v328, %v494
  %v524 = vadd.f32 %v331, %v497
  %v525 = vadd.f32 %v334, %v500
  %v526 = vadd.f32 %v337, %v503
  %v527 = vadd.f32 %v340, %v506
  %v528 = vadd.f32 %v343, %v509
  %v529 = vadd.f32 %v346, %v512
  %s530 = scalar_lea.vmem %s0, 576
  %v531 = vld [vmem:[%s530] sm:$0xff]
  %v532 = vld [vmem:[%s530 + $0x10] sm:$0xff]
  %v533 = vld [vmem:[%s530 + $0x20] sm:$0xff]
  %v534 = vld [vmem:[%s530 + $0x30] sm:$0xff]
  %v535 = vld [vmem:[%s530 + $0x40] sm:$0xff]
  %v536 = vld [vmem:[%s530 + $0x50] sm:$0xff]
  %v537 = vld [vmem:[%s530 + $0x60] sm:$0xff]
  %v538 = vld [vmem:[%s530 + $0x70] sm:$0xff]
  %v539 = vld [vmem:[%s530 + $0x90] sm:$0xff]
  %v540 = vld [vmem:[%s530 + $0xa0] sm:$0xff]
  %v541 = vld [vmem:[%s530 + $0xb0] sm:$0xff]
  %v542 = vld [vmem:[%s530 + $0xc0] sm:$0xff]
  %v543 = vld [vmem:[%s530 + $0xd0] sm:$0xff]
  %v544 = vld [vmem:[%s530 + $0xe0] sm:$0xff]
  %v545 = vld [vmem:[%s530 + $0xf0] sm:$0xff]
  %v546 = vld [vmem:[%s530 + $0x100] sm:$0xff]
  %v547 = vmul.f32 %v531, 0.007843138
  %v548 = vmul.f32 %v532, 0.007843138
  %v549 = vmul.f32 %v533, 0.007843138
  %v550 = vmul.f32 %v534, 0.007843138
  %v551 = vmul.f32 %v535, 0.007843138
  %v552 = vmul.f32 %v536, 0.007843138
  %v553 = vmul.f32 %v537, 0.007843138
  %v554 = vmul.f32 %v538, 0.007843138
  %v555 = vmul.f32 %v539, 0.007843138
  %v556 = vmul.f32 %v540, 0.007843138
  %v557 = vmul.f32 %v541, 0.007843138
  %v558 = vmul.f32 %v542, 0.007843138
  %v559 = vmul.f32 %v543, 0.007843138
  %v560 = vmul.f32 %v544, 0.007843138
  %v561 = vmul.f32 %v545, 0.007843138
  %v562 = vmul.f32 %v546, 0.007843138
  %v563 = vadd.f32 %v547, -1.0
  %v564 = vadd.f32 %v548, -1.0
  %v565 = vadd.f32 %v549, -1.0
  %v566 = vadd.f32 %v550, -1.0
  %v567 = vadd.f32 %v551, -1.0
  %v568 = vadd.f32 %v552, -1.0
  %v569 = vadd.f32 %v553, -1.0
  %v570 = vadd.f32 %v554, -1.0
  %v571 = vadd.f32 %v555, -1.0
  %v572 = vadd.f32 %v556, -1.0
  %v573 = vadd.f32 %v557, -1.0
  %v574 = vadd.f32 %v558, -1.0
  %v575 = vadd.f32 %v559, -1.0
  %v576 = vadd.f32 %v560, -1.0
  %v577 = vadd.f32 %v561, -1.0
  %v578 = vadd.f32 %v562, -1.0
  %s579 = scalar_lea.vmem %s1, 12
  %v580 = vld [vmem:[%s579] sm:$0x7]
  %v582 = vsel %vm114, %v563, 0
  %v585 = vsel %vm114, %v564, 0
  %v588 = vsel %vm114, %v565, 0
  %v591 = vsel %vm114, %v566, 0
  %v594 = vsel %vm114, %v567, 0
  %v597 = vsel %vm114, %v568, 0
  %v600 = vsel %vm114, %v569, 0
  %v603 = vsel %vm114, %v570, 0
  %v606 = vsel %vm114, %v571, 0
  %v609 = vsel %vm114, %v572, 0
  %v612 = vsel %vm114, %v573, 0
  %v615 = vsel %vm114, %v574, 0
  %v618 = vsel %vm114, %v575, 0
  %v621 = vsel %vm114, %v576, 0
  %v624 = vsel %vm114, %v577, 0
  %v627 = vsel %vm114, %v578, 0
  %v630 = vsel %vm163, %v580, 0
  %632 = vmatpush.msra.mxu0 0.0
  %633 = vmatpush.msra.mxu0 0.0
  %634 = vmatpush.msra.mxu0 0.0
  %635 = vmatpush.msra.mxu0 0.0
  %636 = vmatpush.msra.mxu0 0.0
  %637 = vmatpush.msra.mxu0 0.0
  %638 = vmatpush.msra.mxu0 0.0
  %639 = vmatpush.msra.mxu0 0.0
  %640 = vmatpush.msra.mxu0 0.0
  %641 = vmatpush.msra.mxu0 0.0
  %642 = vmatpush.msra.mxu0 0.0
  %643 = vmatpush.msra.mxu0 0.0
  %644 = vmatpush.msra.mxu0 0.0
  %645 = vmatpush.msra.mxu0 0.0
  %646 = vmatpush.msra.mxu0 0.0
  %647 = vmatpush.msra.mxu0 %v630
  %648 = vmatmul.f32.gmra.mxu0 %v582
  %v649 = vpop.f32.mrf.mxu0
  %v650 = vadd.f32 0.0, %v649
  %651 = vmatmul.f32.gmra.mxu0 %v585
  %v652 = vpop.f32.mrf.mxu0
  %v653 = vadd.f32 0.0, %v652
  %654 = vmatmul.f32.gmra.mxu0 %v588
  %v655 = vpop.f32.mrf.mxu0
  %v656 = vadd.f32 0.0, %v655
  %657 = vmatmul.f32.gmra.mxu0 %v591
  %v658 = vpop.f32.mrf.mxu0
  %v659 = vadd.f32 0.0, %v658
  %660 = vmatmul.f32.gmra.mxu0 %v594
  %v661 = vpop.f32.mrf.mxu0
  %v662 = vadd.f32 0.0, %v661
  %663 = vmatmul.f32.gmra.mxu0 %v597
  %v664 = vpop.f32.mrf.mxu0
  %v665 = vadd.f32 0.0, %v664
  %666 = vmatmul.f32.gmra.mxu0 %v600
  %v667 = vpop.f32.mrf.mxu0
  %v668 = vadd.f32 0.0, %v667
  %669 = vmatmul.f32.gmra.mxu0 %v603
  %v670 = vpop.f32.mrf.mxu0
  %v671 = vadd.f32 0.0, %v670
  %672 = vmatmul.f32.gmra.mxu0 %v606
  %v673 = vpop.f32.mrf.mxu0
  %v674 = vadd.f32 0.0, %v673
  %675 = vmatmul.f32.gmra.mxu0 %v609
  %v676 = vpop.f32.mrf.mxu0
  %v677 = vadd.f32 0.0, %v676
  %678 = vmatmul.f32.gmra.mxu0 %v612
  %v679 = vpop.f32.mrf.mxu0
  %v680 = vadd.f32 0.0, %v679
  %681 = vmatmul.f32.gmra.mxu0 %v615
  %v682 = vpop.f32.mrf.mxu0
  %v683 = vadd.f32 0.0, %v682
  %684 = vmatmul.f32.gmra.mxu0 %v618
  %v685 = vpop.f32.mrf.mxu0
  %v686 = vadd.f32 0.0, %v685
  %687 = vmatmul.f32.gmra.mxu0 %v621
  %v688 = vpop.f32.mrf.mxu0
  %v689 = vadd.f32 0.0, %v688
  %690 = vmatmul.f32.gmra.mxu0 %v624
  %v691 = vpop.f32.mrf.mxu0
  %v692 = vadd.f32 0.0, %v691
  %693 = vmatmul.f32.gmra.mxu0 %v627
  %v694 = vpop.f32.mrf.mxu0
  %v695 = vadd.f32 0.0, %v694
  %696 = vdwg.mxu0
  %v697 = vadd.f32 %v514, %v650
  %v698 = vadd.f32 %v515, %v653
  %v699 = vadd.f32 %v516, %v656
  %v700 = vadd.f32 %v517, %v659
  %v701 = vadd.f32 %v518, %v662
  %v702 = vadd.f32 %v519, %v665
  %v703 = vadd.f32 %v520, %v668
  %v704 = vadd.f32 %v521, %v671
  %v705 = vadd.f32 %v522, %v674
  %v706 = vadd.f32 %v523, %v677
  %v707 = vadd.f32 %v524, %v680
  %v708 = vadd.f32 %v525, %v683
  %v709 = vadd.f32 %v526, %v686
  %v710 = vadd.f32 %v527, %v689
  %v711 = vadd.f32 %v528, %v692
  %v712 = vadd.f32 %v529, %v695
  %s713 = scalar_lea.vmem %s0, 864
  %v714 = vld [vmem:[%s713] sm:$0xff]
  %v715 = vld [vmem:[%s713 + $0x10] sm:$0xff]
  %v716 = vld [vmem:[%s713 + $0x20] sm:$0xff]
  %v717 = vld [vmem:[%s713 + $0x30] sm:$0xff]
  %v718 = vld [vmem:[%s713 + $0x40] sm:$0xff]
  %v719 = vld [vmem:[%s713 + $0x50] sm:$0xff]
  %v720 = vld [vmem:[%s713 + $0x60] sm:$0xff]
  %v721 = vld [vmem:[%s713 + $0x70] sm:$0xff]
  %v722 = vld [vmem:[%s713 + $0x90] sm:$0xff]
  %v723 = vld [vmem:[%s713 + $0xa0] sm:$0xff]
  %v724 = vld [vmem:[%s713 + $0xb0] sm:$0xff]
  %v725 = vld [vmem:[%s713 + $0xc0] sm:$0xff]
  %v726 = vld [vmem:[%s713 + $0xd0] sm:$0xff]
  %v727 = vld [vmem:[%s713 + $0xe0] sm:$0xff]
  %v728 = vld [vmem:[%s713 + $0xf0] sm:$0xff]
  %v729 = vld [vmem:[%s713 + $0x100] sm:$0xff]
  %v730 = vmul.f32 %v714, 0.007843138
  %v731 = vmul.f32 %v715, 0.007843138
  %v732 = vmul.f32 %v716, 0.007843138
  %v733 = vmul.f32 %v717, 0.007843138
  %v734 = vmul.f32 %v718, 0.007843138
  %v735 = vmul.f32 %v719, 0.007843138
  %v736 = vmul.f32 %v720, 0.007843138
  %v737 = vmul.f32 %v721, 0.007843138
  %v738 = vmul.f32 %v722, 0.007843138
  %v739 = vmul.f32 %v723, 0.007843138
  %v740 = vmul.f32 %v724, 0.007843138
  %v741 = vmul.f32 %v725, 0.007843138
  %v742 = vmul.f32 %v726, 0.007843138
  %v743 = vmul.f32 %v727, 0.007843138
  %v744 = vmul.f32 %v728, 0.007843138
  %v745 = vmul.f32 %v729, 0.007843138
  %v746 = vadd.f32 %v730, -1.0
  %v747 = vadd.f32 %v731, -1.0
  %v748 = vadd.f32 %v732, -1.0
  %v749 = vadd.f32 %v733, -1.0
  %v750 = vadd.f32 %v734, -1.0
  %v751 = vadd.f32 %v735, -1.0
  %v752 = vadd.f32 %v736, -1.0
  %v753 = vadd.f32 %v737, -1.0
  %v754 = vadd.f32 %v738, -1.0
  %v755 = vadd.f32 %v739, -1.0
  %v756 = vadd.f32 %v740, -1.0
  %v757 = vadd.f32 %v741, -1.0
  %v758 = vadd.f32 %v742, -1.0
  %v759 = vadd.f32 %v743, -1.0
  %v760 = vadd.f32 %v744, -1.0
  %v761 = vadd.f32 %v745, -1.0
  %s762 = scalar_lea.vmem %s1, 16
  %v763 = vld [vmem:[%s762] sm:$0x7]
  %v765 = vsel %vm114, %v746, 0
  %v768 = vsel %vm114, %v747, 0
  %v771 = vsel %vm114, %v748, 0
  %v774 = vsel %vm114, %v749, 0
  %v777 = vsel %vm114, %v750, 0
  %v780 = vsel %vm114, %v751, 0
  %v783 = vsel %vm114, %v752, 0
  %v786 = vsel %vm114, %v753, 0
  %v789 = vsel %vm114, %v754, 0
  %v792 = vsel %vm114, %v755, 0
  %v795 = vsel %vm114, %v756, 0
  %v798 = vsel %vm114, %v757, 0
  %v801 = vsel %vm114, %v758, 0
  %v804 = vsel %vm114, %v759, 0
  %v807 = vsel %vm114, %v760, 0
  %v810 = vsel %vm114, %v761, 0
  %v813 = vsel %vm163, %v763, 0
  %815 = vmatpush.msra.mxu0 0.0
  %816 = vmatpush.msra.mxu0 0.0
  %817 = vmatpush.msra.mxu0 0.0
  %818 = vmatpush.msra.mxu0 0.0
  %819 = vmatpush.msra.mxu0 0.0
  %820 = vmatpush.msra.mxu0 0.0
  %821 = vmatpush.msra.mxu0 0.0
  %822 = vmatpush.msra.mxu0 0.0
  %823 = vmatpush.msra.mxu0 0.0
  %824 = vmatpush.msra.mxu0 0.0
  %825 = vmatpush.msra.mxu0 0.0
  %826 = vmatpush.msra.mxu0 0.0
  %827 = vmatpush.msra.mxu0 0.0
  %828 = vmatpush.msra.mxu0 0.0
  %829 = vmatpush.msra.mxu0 0.0
  %830 = vmatpush.msra.mxu0 %v813
  %831 = vmatmul.f32.gmra.mxu0 %v765
  %v832 = vpop.f32.mrf.mxu0
  %v833 = vadd.f32 0.0, %v832
  %834 = vmatmul.f32.gmra.mxu0 %v768
  %v835 = vpop.f32.mrf.mxu0
  %v836 = vadd.f32 0.0, %v835
  %837 = vmatmul.f32.gmra.mxu0 %v771
  %v838 = vpop.f32.mrf.mxu0
  %v839 = vadd.f32 0.0, %v838
  %840 = vmatmul.f32.gmra.mxu0 %v774
  %v841 = vpop.f32.mrf.mxu0
  %v842 = vadd.f32 0.0, %v841
  %843 = vmatmul.f32.gmra.mxu0 %v777
  %v844 = vpop.f32.mrf.mxu0
  %v845 = vadd.f32 0.0, %v844
  %846 = vmatmul.f32.gmra.mxu0 %v780
  %v847 = vpop.f32.mrf.mxu0
  %v848 = vadd.f32 0.0, %v847
  %849 = vmatmul.f32.gmra.mxu0 %v783
  %v850 = vpop.f32.mrf.mxu0
  %v851 = vadd.f32 0.0, %v850
  %852 = vmatmul.f32.gmra.mxu0 %v786
  %v853 = vpop.f32.mrf.mxu0
  %v854 = vadd.f32 0.0, %v853
  %855 = vmatmul.f32.gmra.mxu0 %v789
  %v856 = vpop.f32.mrf.mxu0
  %v857 = vadd.f32 0.0, %v856
  %858 = vmatmul.f32.gmra.mxu0 %v792
  %v859 = vpop.f32.mrf.mxu0
  %v860 = vadd.f32 0.0, %v859
  %861 = vmatmul.f32.gmra.mxu0 %v795
  %v862 = vpop.f32.mrf.mxu0
  %v863 = vadd.f32 0.0, %v862
  %864 = vmatmul.f32.gmra.mxu0 %v798
  %v865 = vpop.f32.mrf.mxu0
  %v866 = vadd.f32 0.0, %v865
  %867 = vmatmul.f32.gmra.mxu0 %v801
  %v868 = vpop.f32.mrf.mxu0
  %v869 = vadd.f32 0.0, %v868
  %870 = vmatmul.f32.gmra.mxu0 %v804
  %v871 = vpop.f32.mrf.mxu0
  %v872 = vadd.f32 0.0, %v871
  %873 = vmatmul.f32.gmra.mxu0 %v807
  %v874 = vpop.f32.mrf.mxu0
  %v875 = vadd.f32 0.0, %v874
  %876 = vmatmul.f32.gmra.mxu0 %v810
  %v877 = vpop.f32.mrf.mxu0
  %v878 = vadd.f32 0.0, %v877
  %879 = vdwg.mxu0
  %v880 = vadd.f32 %v697, %v833
  %v881 = vadd.f32 %v698, %v836
  %v882 = vadd.f32 %v699, %v839
  %v883 = vadd.f32 %v700, %v842
  %v884 = vadd.f32 %v701, %v845
  %v885 = vadd.f32 %v702, %v848
  %v886 = vadd.f32 %v703, %v851
  %v887 = vadd.f32 %v704, %v854
  %v888 = vadd.f32 %v705, %v857
  %v889 = vadd.f32 %v706, %v860
  %v890 = vadd.f32 %v707, %v863
  %v891 = vadd.f32 %v708, %v866
  %v892 = vadd.f32 %v709, %v869
  %v893 = vadd.f32 %v710, %v872
  %v894 = vadd.f32 %v711, %v875
  %v895 = vadd.f32 %v712, %v878
  %v896 = vld [vmem:[%s530 + $0x1] sm:$0xff]
  %v897 = vld [vmem:[%s530 + $0x11] sm:$0xff]
  %v898 = vld [vmem:[%s530 + $0x21] sm:$0xff]
  %v899 = vld [vmem:[%s530 + $0x31] sm:$0xff]
  %v900 = vld [vmem:[%s530 + $0x41] sm:$0xff]
  %v901 = vld [vmem:[%s530 + $0x51] sm:$0xff]
  %v902 = vld [vmem:[%s530 + $0x61] sm:$0xff]
  %v903 = vld [vmem:[%s530 + $0x71] sm:$0xff]
  %v904 = vld [vmem:[%s530 + $0x91] sm:$0xff]
  %v905 = vld [vmem:[%s530 + $0xa1] sm:$0xff]
  %v906 = vld [vmem:[%s530 + $0xb1] sm:$0xff]
  %v907 = vld [vmem:[%s530 + $0xc1] sm:$0xff]
  %v908 = vld [vmem:[%s530 + $0xd1] sm:$0xff]
  %v909 = vld [vmem:[%s530 + $0xe1] sm:$0xff]
  %v910 = vld [vmem:[%s530 + $0xf1] sm:$0xff]
  %v911 = vld [vmem:[%s530 + $0x101] sm:$0xff]
  %v912 = vmul.f32 %v896, 0.007843138
  %v913 = vmul.f32 %v897, 0.007843138
  %v914 = vmul.f32 %v898, 0.007843138
  %v915 = vmul.f32 %v899, 0.007843138
  %v916 = vmul.f32 %v900, 0.007843138
  %v917 = vmul.f32 %v901, 0.007843138
  %v918 = vmul.f32 %v902, 0.007843138
  %v919 = vmul.f32 %v903, 0.007843138
  %v920 = vmul.f32 %v904, 0.007843138
  %v921 = vmul.f32 %v905, 0.007843138
  %v922 = vmul.f32 %v906, 0.007843138
  %v923 = vmul.f32 %v907, 0.007843138
  %v924 = vmul.f32 %v908, 0.007843138
  %v925 = vmul.f32 %v909, 0.007843138
  %v926 = vmul.f32 %v910, 0.007843138
  %v927 = vmul.f32 %v911, 0.007843138
  %v928 = vadd.f32 %v912, -1.0
  %v929 = vadd.f32 %v913, -1.0
  %v930 = vadd.f32 %v914, -1.0
  %v931 = vadd.f32 %v915, -1.0
  %v932 = vadd.f32 %v916, -1.0
  %v933 = vadd.f32 %v917, -1.0
  %v934 = vadd.f32 %v918, -1.0
  %v935 = vadd.f32 %v919, -1.0
  %v936 = vadd.f32 %v920, -1.0
  %v937 = vadd.f32 %v921, -1.0
  %v938 = vadd.f32 %v922, -1.0
  %v939 = vadd.f32 %v923, -1.0
  %v940 = vadd.f32 %v924, -1.0
  %v941 = vadd.f32 %v925, -1.0
  %v942 = vadd.f32 %v926, -1.0
  %v943 = vadd.f32 %v927, -1.0
  %s944 = scalar_lea.vmem %s1, 20
  %v945 = vld [vmem:[%s944] sm:$0x7]
  %v947 = vsel %vm114, %v928, 0
  %v950 = vsel %vm114, %v929, 0
  %v953 = vsel %vm114, %v930, 0
  %v956 = vsel %vm114, %v931, 0
  %v959 = vsel %vm114, %v932, 0
  %v962 = vsel %vm114, %v933, 0
  %v965 = vsel %vm114, %v934, 0
  %v968 = vsel %vm114, %v935, 0
  %v971 = vsel %vm114, %v936, 0
  %v974 = vsel %vm114, %v937, 0
  %v977 = vsel %vm114, %v938, 0
  %v980 = vsel %vm114, %v939, 0
  %v983 = vsel %vm114, %v940, 0
  %v986 = vsel %vm114, %v941, 0
  %v989 = vsel %vm114, %v942, 0
  %v992 = vsel %vm114, %v943, 0
  %v995 = vsel %vm163, %v945, 0
  %997 = vmatpush.msra.mxu0 0.0
  %998 = vmatpush.msra.mxu0 0.0
  %999 = vmatpush.msra.mxu0 0.0
  %1000 = vmatpush.msra.mxu0 0.0
  %1001 = vmatpush.msra.mxu0 0.0
  %1002 = vmatpush.msra.mxu0 0.0
  %1003 = vmatpush.msra.mxu0 0.0
  %1004 = vmatpush.msra.mxu0 0.0
  %1005 = vmatpush.msra.mxu0 0.0
  %1006 = vmatpush.msra.mxu0 0.0
  %1007 = vmatpush.msra.mxu0 0.0
  %1008 = vmatpush.msra.mxu0 0.0
  %1009 = vmatpush.msra.mxu0 0.0
  %1010 = vmatpush.msra.mxu0 0.0
  %1011 = vmatpush.msra.mxu0 0.0
  %1012 = vmatpush.msra.mxu0 %v995
  %1013 = vmatmul.f32.gmra.mxu0 %v947
  %v1014 = vpop.f32.mrf.mxu0
  %v1015 = vadd.f32 0.0, %v1014
  %1016 = vmatmul.f32.gmra.mxu0 %v950
  %v1017 = vpop.f32.mrf.mxu0
  %v1018 = vadd.f32 0.0, %v1017
  %1019 = vmatmul.f32.gmra.mxu0 %v953
  %v1020 = vpop.f32.mrf.mxu0
  %v1021 = vadd.f32 0.0, %v1020
  %1022 = vmatmul.f32.gmra.mxu0 %v956
  %v1023 = vpop.f32.mrf.mxu0
  %v1024 = vadd.f32 0.0, %v1023
  %1025 = vmatmul.f32.gmra.mxu0 %v959
  %v1026 = vpop.f32.mrf.mxu0
  %v1027 = vadd.f32 0.0, %v1026
  %1028 = vmatmul.f32.gmra.mxu0 %v962
  %v1029 = vpop.f32.mrf.mxu0
  %v1030 = vadd.f32 0.0, %v1029
  %1031 = vmatmul.f32.gmra.mxu0 %v965
  %v1032 = vpop.f32.mrf.mxu0
  %v1033 = vadd.f32 0.0, %v1032
  %1034 = vmatmul.f32.gmra.mxu0 %v968
  %v1035 = vpop.f32.mrf.mxu0
  %v1036 = vadd.f32 0.0, %v1035
  %1037 = vmatmul.f32.gmra.mxu0 %v971
  %v1038 = vpop.f32.mrf.mxu0
  %v1039 = vadd.f32 0.0, %v1038
  %1040 = vmatmul.f32.gmra.mxu0 %v974
  %v1041 = vpop.f32.mrf.mxu0
  %v1042 = vadd.f32 0.0, %v1041
  %1043 = vmatmul.f32.gmra.mxu0 %v977
  %v1044 = vpop.f32.mrf.mxu0
  %v1045 = vadd.f32 0.0, %v1044
  %1046 = vmatmul.f32.gmra.mxu0 %v980
  %v1047 = vpop.f32.mrf.mxu0
  %v1048 = vadd.f32 0.0, %v1047
  %1049 = vmatmul.f32.gmra.mxu0 %v983
  %v1050 = vpop.f32.mrf.mxu0
  %v1051 = vadd.f32 0.0, %v1050
  %1052 = vmatmul.f32.gmra.mxu0 %v986
  %v1053 = vpop.f32.mrf.mxu0
  %v1054 = vadd.f32 0.0, %v1053
  %1055 = vmatmul.f32.gmra.mxu0 %v989
  %v1056 = vpop.f32.mrf.mxu0
  %v1057 = vadd.f32 0.0, %v1056
  %1058 = vmatmul.f32.gmra.mxu0 %v992
  %v1059 = vpop.f32.mrf.mxu0
  %v1060 = vadd.f32 0.0, %v1059
  %1061 = vdwg.mxu0
  %v1062 = vadd.f32 %v880, %v1015
  %v1063 = vadd.f32 %v881, %v1018
  %v1064 = vadd.f32 %v882, %v1021
  %v1065 = vadd.f32 %v883, %v1024
  %v1066 = vadd.f32 %v884, %v1027
  %v1067 = vadd.f32 %v885, %v1030
  %v1068 = vadd.f32 %v886, %v1033
  %v1069 = vadd.f32 %v887, %v1036
  %v1070 = vadd.f32 %v888, %v1039
  %v1071 = vadd.f32 %v889, %v1042
  %v1072 = vadd.f32 %v890, %v1045
  %v1073 = vadd.f32 %v891, %v1048
  %v1074 = vadd.f32 %v892, %v1051
  %v1075 = vadd.f32 %v893, %v1054
  %v1076 = vadd.f32 %v894, %v1057
  %v1077 = vadd.f32 %v895, %v1060
  %s1078 = scalar_lea.vmem %s0, 16
  %v1079 = vld [vmem:[%s1078] sm:$0xff]
  %v1080 = vld [vmem:[%s1078 + $0x10] sm:$0xff]
  %v1081 = vld [vmem:[%s1078 + $0x20] sm:$0xff]
  %v1082 = vld [vmem:[%s1078 + $0x30] sm:$0xff]
  %v1083 = vld [vmem:[%s1078 + $0x40] sm:$0xff]
  %v1084 = vld [vmem:[%s1078 + $0x50] sm:$0xff]
  %v1085 = vld [vmem:[%s1078 + $0x60] sm:$0xff]
  %v1086 = vld [vmem:[%s1078 + $0x70] sm:$0xff]
  %v1087 = vld [vmem:[%s1078 + $0x90] sm:$0xff]
  %v1088 = vld [vmem:[%s1078 + $0xa0] sm:$0xff]
  %v1089 = vld [vmem:[%s1078 + $0xb0] sm:$0xff]
  %v1090 = vld [vmem:[%s1078 + $0xc0] sm:$0xff]
  %v1091 = vld [vmem:[%s1078 + $0xd0] sm:$0xff]
  %v1092 = vld [vmem:[%s1078 + $0xe0] sm:$0xff]
  %v1093 = vld [vmem:[%s1078 + $0xf0] sm:$0xff]
  %v1094 = vld [vmem:[%s1078 + $0x100] sm:$0xff]
  %v1095 = vmul.f32 %v1079, 0.007843138
  %v1096 = vmul.f32 %v1080, 0.007843138
  %v1097 = vmul.f32 %v1081, 0.007843138
  %v1098 = vmul.f32 %v1082, 0.007843138
  %v1099 = vmul.f32 %v1083, 0.007843138
  %v1100 = vmul.f32 %v1084, 0.007843138
  %v1101 = vmul.f32 %v1085, 0.007843138
  %v1102 = vmul.f32 %v1086, 0.007843138
  %v1103 = vmul.f32 %v1087, 0.007843138
  %v1104 = vmul.f32 %v1088, 0.007843138
  %v1105 = vmul.f32 %v1089, 0.007843138
  %v1106 = vmul.f32 %v1090, 0.007843138
  %v1107 = vmul.f32 %v1091, 0.007843138
  %v1108 = vmul.f32 %v1092, 0.007843138
  %v1109 = vmul.f32 %v1093, 0.007843138
  %v1110 = vmul.f32 %v1094, 0.007843138
  %v1111 = vadd.f32 %v1095, -1.0
  %v1112 = vadd.f32 %v1096, -1.0
  %v1113 = vadd.f32 %v1097, -1.0
  %v1114 = vadd.f32 %v1098, -1.0
  %v1115 = vadd.f32 %v1099, -1.0
  %v1116 = vadd.f32 %v1100, -1.0
  %v1117 = vadd.f32 %v1101, -1.0
  %v1118 = vadd.f32 %v1102, -1.0
  %v1119 = vadd.f32 %v1103, -1.0
  %v1120 = vadd.f32 %v1104, -1.0
  %v1121 = vadd.f32 %v1105, -1.0
  %v1122 = vadd.f32 %v1106, -1.0
  %v1123 = vadd.f32 %v1107, -1.0
  %v1124 = vadd.f32 %v1108, -1.0
  %v1125 = vadd.f32 %v1109, -1.0
  %v1126 = vadd.f32 %v1110, -1.0
  %s1127 = scalar_lea.vmem %s1, 24
  %v1128 = vld [vmem:[%s1127] sm:$0x7]
  %v1130 = vsel %vm114, %v1111, 0
  %v1133 = vsel %vm114, %v1112, 0
  %v1136 = vsel %vm114, %v1113, 0
  %v1139 = vsel %vm114, %v1114, 0
  %v1142 = vsel %vm114, %v1115, 0
  %v1145 = vsel %vm114, %v1116, 0
  %v1148 = vsel %vm114, %v1117, 0
  %v1151 = vsel %vm114, %v1118, 0
  %v1154 = vsel %vm114, %v1119, 0
  %v1157 = vsel %vm114, %v1120, 0
  %v1160 = vsel %vm114, %v1121, 0
  %v1163 = vsel %vm114, %v1122, 0
  %v1166 = vsel %vm114, %v1123, 0
  %v1169 = vsel %vm114, %v1124, 0
  %v1172 = vsel %vm114, %v1125, 0
  %v1175 = vsel %vm114, %v1126, 0
  %v1178 = vsel %vm163, %v1128, 0
  %1180 = vmatpush.msra.mxu0 0.0
  %1181 = vmatpush.msra.mxu0 0.0
  %1182 = vmatpush.msra.mxu0 0.0
  %1183 = vmatpush.msra.mxu0 0.0
  %1184 = vmatpush.msra.mxu0 0.0
  %1185 = vmatpush.msra.mxu0 0.0
  %1186 = vmatpush.msra.mxu0 0.0
  %1187 = vmatpush.msra.mxu0 0.0
  %1188 = vmatpush.msra.mxu0 0.0
  %1189 = vmatpush.msra.mxu0 0.0
  %1190 = vmatpush.msra.mxu0 0.0
  %1191 = vmatpush.msra.mxu0 0.0
  %1192 = vmatpush.msra.mxu0 0.0
  %1193 = vmatpush.msra.mxu0 0.0
  %1194 = vmatpush.msra.mxu0 0.0
  %1195 = vmatpush.msra.mxu0 %v1178
  %1196 = vmatmul.f32.gmra.mxu0 %v1130
  %v1197 = vpop.f32.mrf.mxu0
  %v1198 = vadd.f32 0.0, %v1197
  %1199 = vmatmul.f32.gmra.mxu0 %v1133
  %v1200 = vpop.f32.mrf.mxu0
  %v1201 = vadd.f32 0.0, %v1200
  %1202 = vmatmul.f32.gmra.mxu0 %v1136
  %v1203 = vpop.f32.mrf.mxu0
  %v1204 = vadd.f32 0.0, %v1203
  %1205 = vmatmul.f32.gmra.mxu0 %v1139
  %v1206 = vpop.f32.mrf.mxu0
  %v1207 = vadd.f32 0.0, %v1206
  %1208 = vmatmul.f32.gmra.mxu0 %v1142
  %v1209 = vpop.f32.mrf.mxu0
  %v1210 = vadd.f32 0.0, %v1209
  %1211 = vmatmul.f32.gmra.mxu0 %v1145
  %v1212 = vpop.f32.mrf.mxu0
  %v1213 = vadd.f32 0.0, %v1212
  %1214 = vmatmul.f32.gmra.mxu0 %v1148
  %v1215 = vpop.f32.mrf.mxu0
  %v1216 = vadd.f32 0.0, %v1215
  %1217 = vmatmul.f32.gmra.mxu0 %v1151
  %v1218 = vpop.f32.mrf.mxu0
  %v1219 = vadd.f32 0.0, %v1218
  %1220 = vmatmul.f32.gmra.mxu0 %v1154
  %v1221 = vpop.f32.mrf.mxu0
  %v1222 = vadd.f32 0.0, %v1221
  %1223 = vmatmul.f32.gmra.mxu0 %v1157
  %v1224 = vpop.f32.mrf.mxu0
  %v1225 = vadd.f32 0.0, %v1224
  %1226 = vmatmul.f32.gmra.mxu0 %v1160
  %v1227 = vpop.f32.mrf.mxu0
  %v1228 = vadd.f32 0.0, %v1227
  %1229 = vmatmul.f32.gmra.mxu0 %v1163
  %v1230 = vpop.f32.mrf.mxu0
  %v1231 = vadd.f32 0.0, %v1230
  %1232 = vmatmul.f32.gmra.mxu0 %v1166
  %v1233 = vpop.f32.mrf.mxu0
  %v1234 = vadd.f32 0.0, %v1233
  %1235 = vmatmul.f32.gmra.mxu0 %v1169
  %v1236 = vpop.f32.mrf.mxu0
  %v1237 = vadd.f32 0.0, %v1236
  %1238 = vmatmul.f32.gmra.mxu0 %v1172
  %v1239 = vpop.f32.mrf.mxu0
  %v1240 = vadd.f32 0.0, %v1239
  %1241 = vmatmul.f32.gmra.mxu0 %v1175
  %v1242 = vpop.f32.mrf.mxu0
  %v1243 = vadd.f32 0.0, %v1242
  %1244 = vdwg.mxu0
  %v1245 = vadd.f32 %v1062, %v1198
  %v1246 = vadd.f32 %v1063, %v1201
  %v1247 = vadd.f32 %v1064, %v1204
  %v1248 = vadd.f32 %v1065, %v1207
  %v1249 = vadd.f32 %v1066, %v1210
  %v1250 = vadd.f32 %v1067, %v1213
  %v1251 = vadd.f32 %v1068, %v1216
  %v1252 = vadd.f32 %v1069, %v1219
  %v1253 = vadd.f32 %v1070, %v1222
  %v1254 = vadd.f32 %v1071, %v1225
  %v1255 = vadd.f32 %v1072, %v1228
  %v1256 = vadd.f32 %v1073, %v1231
  %v1257 = vadd.f32 %v1074, %v1234
  %v1258 = vadd.f32 %v1075, %v1237
  %v1259 = vadd.f32 %v1076, %v1240
  %v1260 = vadd.f32 %v1077, %v1243
  %s1261 = scalar_lea.vmem %s0, 304
  %v1262 = vld [vmem:[%s1261] sm:$0xff]
  %v1263 = vld [vmem:[%s1261 + $0x10] sm:$0xff]
  %v1264 = vld [vmem:[%s1261 + $0x20] sm:$0xff]
  %v1265 = vld [vmem:[%s1261 + $0x30] sm:$0xff]
  %v1266 = vld [vmem:[%s1261 + $0x40] sm:$0xff]
  %v1267 = vld [vmem:[%s1261 + $0x50] sm:$0xff]
  %v1268 = vld [vmem:[%s1261 + $0x60] sm:$0xff]
  %v1269 = vld [vmem:[%s1261 + $0x70] sm:$0xff]
  %v1270 = vld [vmem:[%s1261 + $0x90] sm:$0xff]
  %v1271 = vld [vmem:[%s1261 + $0xa0] sm:$0xff]
  %v1272 = vld [vmem:[%s1261 + $0xb0] sm:$0xff]
  %v1273 = vld [vmem:[%s1261 + $0xc0] sm:$0xff]
  %v1274 = vld [vmem:[%s1261 + $0xd0] sm:$0xff]
  %v1275 = vld [vmem:[%s1261 + $0xe0] sm:$0xff]
  %v1276 = vld [vmem:[%s1261 + $0xf0] sm:$0xff]
  %v1277 = vld [vmem:[%s1261 + $0x100] sm:$0xff]
  %v1278 = vmul.f32 %v1262, 0.007843138
  %v1279 = vmul.f32 %v1263, 0.007843138
  %v1280 = vmul.f32 %v1264, 0.007843138
  %v1281 = vmul.f32 %v1265, 0.007843138
  %v1282 = vmul.f32 %v1266, 0.007843138
  %v1283 = vmul.f32 %v1267, 0.007843138
  %v1284 = vmul.f32 %v1268, 0.007843138
  %v1285 = vmul.f32 %v1269, 0.007843138
  %v1286 = vmul.f32 %v1270, 0.007843138
  %v1287 = vmul.f32 %v1271, 0.007843138
  %v1288 = vmul.f32 %v1272, 0.007843138
  %v1289 = vmul.f32 %v1273, 0.007843138
  %v1290 = vmul.f32 %v1274, 0.007843138
  %v1291 = vmul.f32 %v1275, 0.007843138
  %v1292 = vmul.f32 %v1276, 0.007843138
  %v1293 = vmul.f32 %v1277, 0.007843138
  %v1294 = vadd.f32 %v1278, -1.0
  %v1295 = vadd.f32 %v1279, -1.0
  %v1296 = vadd.f32 %v1280, -1.0
  %v1297 = vadd.f32 %v1281, -1.0
  %v1298 = vadd.f32 %v1282, -1.0
  %v1299 = vadd.f32 %v1283, -1.0
  %v1300 = vadd.f32 %v1284, -1.0
  %v1301 = vadd.f32 %v1285, -1.0
  %v1302 = vadd.f32 %v1286, -1.0
  %v1303 = vadd.f32 %v1287, -1.0
  %v1304 = vadd.f32 %v1288, -1.0
  %v1305 = vadd.f32 %v1289, -1.0
  %v1306 = vadd.f32 %v1290, -1.0
  %v1307 = vadd.f32 %v1291, -1.0
  %v1308 = vadd.f32 %v1292, -1.0
  %v1309 = vadd.f32 %v1293, -1.0
  %s1310 = scalar_lea.vmem %s1, 28
  %v1311 = vld [vmem:[%s1310] sm:$0x7]
  %v1313 = vsel %vm114, %v1294, 0
  %v1316 = vsel %vm114, %v1295, 0
  %v1319 = vsel %vm114, %v1296, 0
  %v1322 = vsel %vm114, %v1297, 0
  %v1325 = vsel %vm114, %v1298, 0
  %v1328 = vsel %vm114, %v1299, 0
  %v1331 = vsel %vm114, %v1300, 0
  %v1334 = vsel %vm114, %v1301, 0
  %v1337 = vsel %vm114, %v1302, 0
  %v1340 = vsel %vm114, %v1303, 0
  %v1343 = vsel %vm114, %v1304, 0
  %v1346 = vsel %vm114, %v1305, 0
  %v1349 = vsel %vm114, %v1306, 0
  %v1352 = vsel %vm114, %v1307, 0
  %v1355 = vsel %vm114, %v1308, 0
  %v1358 = vsel %vm114, %v1309, 0
  %v1361 = vsel %vm163, %v1311, 0
  %1363 = vmatpush.msra.mxu0 0.0
  %1364 = vmatpush.msra.mxu0 0.0
  %1365 = vmatpush.msra.mxu0 0.0
  %1366 = vmatpush.msra.mxu0 0.0
  %1367 = vmatpush.msra.mxu0 0.0
  %1368 = vmatpush.msra.mxu0 0.0
  %1369 = vmatpush.msra.mxu0 0.0
  %1370 = vmatpush.msra.mxu0 0.0
  %1371 = vmatpush.msra.mxu0 0.0
  %1372 = vmatpush.msra.mxu0 0.0
  %1373 = vmatpush.msra.mxu0 0.0
  %1374 = vmatpush.msra.mxu0 0.0
  %1375 = vmatpush.msra.mxu0 0.0
  %1376 = vmatpush.msra.mxu0 0.0
  %1377 = vmatpush.msra.mxu0 0.0
  %1378 = vmatpush.msra.mxu0 %v1361
  %1379 = vmatmul.f32.gmra.mxu0 %v1313
  %v1380 = vpop.f32.mrf.mxu0
  %v1381 = vadd.f32 0.0, %v1380
  %1382 = vmatmul.f32.gmra.mxu0 %v1316
  %v1383 = vpop.f32.mrf.mxu0
  %v1384 = vadd.f32 0.0, %v1383
  %1385 = vmatmul.f32.gmra.mxu0 %v1319
  %v1386 = vpop.f32.mrf.mxu0
  %v1387 = vadd.f32 0.0, %v1386
  %1388 = vmatmul.f32.gmra.mxu0 %v1322
  %v1389 = vpop.f32.mrf.mxu0
  %v1390 = vadd.f32 0.0, %v1389
  %1391 = vmatmul.f32.gmra.mxu0 %v1325
  %v1392 = vpop.f32.mrf.mxu0
  %v1393 = vadd.f32 0.0, %v1392
  %1394 = vmatmul.f32.gmra.mxu0 %v1328
  %v1395 = vpop.f32.mrf.mxu0
  %v1396 = vadd.f32 0.0, %v1395
  %1397 = vmatmul.f32.gmra.mxu0 %v1331
  %v1398 = vpop.f32.mrf.mxu0
  %v1399 = vadd.f32 0.0, %v1398
  %1400 = vmatmul.f32.gmra.mxu0 %v1334
  %v1401 = vpop.f32.mrf.mxu0
  %v1402 = vadd.f32 0.0, %v1401
  %1403 = vmatmul.f32.gmra.mxu0 %v1337
  %v1404 = vpop.f32.mrf.mxu0
  %v1405 = vadd.f32 0.0, %v1404
  %1406 = vmatmul.f32.gmra.mxu0 %v1340
  %v1407 = vpop.f32.mrf.mxu0
  %v1408 = vadd.f32 0.0, %v1407
  %1409 = vmatmul.f32.gmra.mxu0 %v1343
  %v1410 = vpop.f32.mrf.mxu0
  %v1411 = vadd.f32 0.0, %v1410
  %1412 = vmatmul.f32.gmra.mxu0 %v1346
  %v1413 = vpop.f32.mrf.mxu0
  %v1414 = vadd.f32 0.0, %v1413
  %1415 = vmatmul.f32.gmra.mxu0 %v1349
  %v1416 = vpop.f32.mrf.mxu0
  %v1417 = vadd.f32 0.0, %v1416
  %1418 = vmatmul.f32.gmra.mxu0 %v1352
  %v1419 = vpop.f32.mrf.mxu0
  %v1420 = vadd.f32 0.0, %v1419
  %1421 = vmatmul.f32.gmra.mxu0 %v1355
  %v1422 = vpop.f32.mrf.mxu0
  %v1423 = vadd.f32 0.0, %v1422
  %1424 = vmatmul.f32.gmra.mxu0 %v1358
  %v1425 = vpop.f32.mrf.mxu0
  %v1426 = vadd.f32 0.0, %v1425
  %1427 = vdwg.mxu0
  %v1428 = vadd.f32 %v1245, %v1381
  %v1429 = vadd.f32 %v1246, %v1384
  %v1430 = vadd.f32 %v1247, %v1387
  %v1431 = vadd.f32 %v1248, %v1390
  %v1432 = vadd.f32 %v1249, %v1393
  %v1433 = vadd.f32 %v1250, %v1396
  %v1434 = vadd.f32 %v1251, %v1399
  %v1435 = vadd.f32 %v1252, %v1402
  %v1436 = vadd.f32 %v1253, %v1405
  %v1437 = vadd.f32 %v1254, %v1408
  %v1438 = vadd.f32 %v1255, %v1411
  %v1439 = vadd.f32 %v1256, %v1414
  %v1440 = vadd.f32 %v1257, %v1417
  %v1441 = vadd.f32 %v1258, %v1420
  %v1442 = vadd.f32 %v1259, %v1423
  %v1443 = vadd.f32 %v1260, %v1426
  %v1444 = vld [vmem:[%s1078 + $0x1] sm:$0xff]
  %v1445 = vld [vmem:[%s1078 + $0x11] sm:$0xff]
  %v1446 = vld [vmem:[%s1078 + $0x21] sm:$0xff]
  %v1447 = vld [vmem:[%s1078 + $0x31] sm:$0xff]
  %v1448 = vld [vmem:[%s1078 + $0x41] sm:$0xff]
  %v1449 = vld [vmem:[%s1078 + $0x51] sm:$0xff]
  %v1450 = vld [vmem:[%s1078 + $0x61] sm:$0xff]
  %v1451 = vld [vmem:[%s1078 + $0x71] sm:$0xff]
  %v1452 = vld [vmem:[%s1078 + $0x91] sm:$0xff]
  %v1453 = vld [vmem:[%s1078 + $0xa1] sm:$0xff]
  %v1454 = vld [vmem:[%s1078 + $0xb1] sm:$0xff]
  %v1455 = vld [vmem:[%s1078 + $0xc1] sm:$0xff]
  %v1456 = vld [vmem:[%s1078 + $0xd1] sm:$0xff]
  %v1457 = vld [vmem:[%s1078 + $0xe1] sm:$0xff]
  %v1458 = vld [vmem:[%s1078 + $0xf1] sm:$0xff]
  %v1459 = vld [vmem:[%s1078 + $0x101] sm:$0xff]
  %v1460 = vmul.f32 %v1444, 0.007843138
  %v1461 = vmul.f32 %v1445, 0.007843138
  %v1462 = vmul.f32 %v1446, 0.007843138
  %v1463 = vmul.f32 %v1447, 0.007843138
  %v1464 = vmul.f32 %v1448, 0.007843138
  %v1465 = vmul.f32 %v1449, 0.007843138
  %v1466 = vmul.f32 %v1450, 0.007843138
  %v1467 = vmul.f32 %v1451, 0.007843138
  %v1468 = vmul.f32 %v1452, 0.007843138
  %v1469 = vmul.f32 %v1453, 0.007843138
  %v1470 = vmul.f32 %v1454, 0.007843138
  %v1471 = vmul.f32 %v1455, 0.007843138
  %v1472 = vmul.f32 %v1456, 0.007843138
  %v1473 = vmul.f32 %v1457, 0.007843138
  %v1474 = vmul.f32 %v1458, 0.007843138
  %v1475 = vmul.f32 %v1459, 0.007843138
  %v1476 = vadd.f32 %v1460, -1.0
  %v1477 = vadd.f32 %v1461, -1.0
  %v1478 = vadd.f32 %v1462, -1.0
  %v1479 = vadd.f32 %v1463, -1.0
  %v1480 = vadd.f32 %v1464, -1.0
  %v1481 = vadd.f32 %v1465, -1.0
  %v1482 = vadd.f32 %v1466, -1.0
  %v1483 = vadd.f32 %v1467, -1.0
  %v1484 = vadd.f32 %v1468, -1.0
  %v1485 = vadd.f32 %v1469, -1.0
  %v1486 = vadd.f32 %v1470, -1.0
  %v1487 = vadd.f32 %v1471, -1.0
  %v1488 = vadd.f32 %v1472, -1.0
  %v1489 = vadd.f32 %v1473, -1.0
  %v1490 = vadd.f32 %v1474, -1.0
  %v1491 = vadd.f32 %v1475, -1.0
  %s1492 = scalar_lea.vmem %s1, 32
  %v1493 = vld [vmem:[%s1492] sm:$0x7]
  %v1495 = vsel %vm114, %v1476, 0
  %v1498 = vsel %vm114, %v1477, 0
  %v1501 = vsel %vm114, %v1478, 0
  %v1504 = vsel %vm114, %v1479, 0
  %v1507 = vsel %vm114, %v1480, 0
  %v1510 = vsel %vm114, %v1481, 0
  %v1513 = vsel %vm114, %v1482, 0
  %v1516 = vsel %vm114, %v1483, 0
  %v1519 = vsel %vm114, %v1484, 0
  %v1522 = vsel %vm114, %v1485, 0
  %v1525 = vsel %vm114, %v1486, 0
  %v1528 = vsel %vm114, %v1487, 0
  %v1531 = vsel %vm114, %v1488, 0
  %v1534 = vsel %vm114, %v1489, 0
  %v1537 = vsel %vm114, %v1490, 0
  %v1540 = vsel %vm114, %v1491, 0
  %v1543 = vsel %vm163, %v1493, 0
  %1545 = vmatpush.msra.mxu0 0.0
  %1546 = vmatpush.msra.mxu0 0.0
  %1547 = vmatpush.msra.mxu0 0.0
  %1548 = vmatpush.msra.mxu0 0.0
  %1549 = vmatpush.msra.mxu0 0.0
  %1550 = vmatpush.msra.mxu0 0.0
  %1551 = vmatpush.msra.mxu0 0.0
  %1552 = vmatpush.msra.mxu0 0.0
  %1553 = vmatpush.msra.mxu0 0.0
  %1554 = vmatpush.msra.mxu0 0.0
  %1555 = vmatpush.msra.mxu0 0.0
  %1556 = vmatpush.msra.mxu0 0.0
  %1557 = vmatpush.msra.mxu0 0.0
  %1558 = vmatpush.msra.mxu0 0.0
  %1559 = vmatpush.msra.mxu0 0.0
  %1560 = vmatpush.msra.mxu0 %v1543
  %1561 = vmatmul.f32.gmra.mxu0 %v1495
  %v1562 = vpop.f32.mrf.mxu0
  %v1563 = vadd.f32 0.0, %v1562
  %1564 = vmatmul.f32.gmra.mxu0 %v1498
  %v1565 = vpop.f32.mrf.mxu0
  %v1566 = vadd.f32 0.0, %v1565
  %1567 = vmatmul.f32.gmra.mxu0 %v1501
  %v1568 = vpop.f32.mrf.mxu0
  %v1569 = vadd.f32 0.0, %v1568
  %1570 = vmatmul.f32.gmra.mxu0 %v1504
  %v1571 = vpop.f32.mrf.mxu0
  %v1572 = vadd.f32 0.0, %v1571
  %1573 = vmatmul.f32.gmra.mxu0 %v1507
  %v1574 = vpop.f32.mrf.mxu0
  %v1575 = vadd.f32 0.0, %v1574
  %1576 = vmatmul.f32.gmra.mxu0 %v1510
  %v1577 = vpop.f32.mrf.mxu0
  %v1578 = vadd.f32 0.0, %v1577
  %1579 = vmatmul.f32.gmra.mxu0 %v1513
  %v1580 = vpop.f32.mrf.mxu0
  %v1581 = vadd.f32 0.0, %v1580
  %1582 = vmatmul.f32.gmra.mxu0 %v1516
  %v1583 = vpop.f32.mrf.mxu0
  %v1584 = vadd.f32 0.0, %v1583
  %1585 = vmatmul.f32.gmra.mxu0 %v1519
  %v1586 = vpop.f32.mrf.mxu0
  %v1587 = vadd.f32 0.0, %v1586
  %1588 = vmatmul.f32.gmra.mxu0 %v1522
  %v1589 = vpop.f32.mrf.mxu0
  %v1590 = vadd.f32 0.0, %v1589
  %1591 = vmatmul.f32.gmra.mxu0 %v1525
  %v1592 = vpop.f32.mrf.mxu0
  %v1593 = vadd.f32 0.0, %v1592
  %1594 = vmatmul.f32.gmra.mxu0 %v1528
  %v1595 = vpop.f32.mrf.mxu0
  %v1596 = vadd.f32 0.0, %v1595
  %1597 = vmatmul.f32.gmra.mxu0 %v1531
  %v1598 = vpop.f32.mrf.mxu0
  %v1599 = vadd.f32 0.0, %v1598
  %1600 = vmatmul.f32.gmra.mxu0 %v1534
  %v1601 = vpop.f32.mrf.mxu0
  %v1602 = vadd.f32 0.0, %v1601
  %1603 = vmatmul.f32.gmra.mxu0 %v1537
  %v1604 = vpop.f32.mrf.mxu0
  %v1605 = vadd.f32 0.0, %v1604
  %1606 = vmatmul.f32.gmra.mxu0 %v1540
  %v1607 = vpop.f32.mrf.mxu0
  %v1608 = vadd.f32 0.0, %v1607
  %1609 = vdwg.mxu0
  %v1610 = vadd.f32 %v1428, %v1563
  %v1611 = vadd.f32 %v1429, %v1566
  %v1612 = vadd.f32 %v1430, %v1569
  %v1613 = vadd.f32 %v1431, %v1572
  %v1614 = vadd.f32 %v1432, %v1575
  %v1615 = vadd.f32 %v1433, %v1578
  %v1616 = vadd.f32 %v1434, %v1581
  %v1617 = vadd.f32 %v1435, %v1584
  %v1618 = vadd.f32 %v1436, %v1587
  %v1619 = vadd.f32 %v1437, %v1590
  %v1620 = vadd.f32 %v1438, %v1593
  %v1621 = vadd.f32 %v1439, %v1596
  %v1622 = vadd.f32 %v1440, %v1599
  %v1623 = vadd.f32 %v1441, %v1602
  %v1624 = vadd.f32 %v1442, %v1605
  %v1625 = vadd.f32 %v1443, %v1608
  %v1626 = vld [vmem:[%s2] sm:$0x1]
  %v1628 = vperm.slane %v1626, 0
  %v1630 = vadd.f32 %v1610, %v1628
  %v1631 = vadd.f32 %v1611, %v1628
  %v1632 = vadd.f32 %v1612, %v1628
  %v1633 = vadd.f32 %v1613, %v1628
  %v1634 = vadd.f32 %v1614, %v1628
  %v1635 = vadd.f32 %v1615, %v1628
  %v1636 = vadd.f32 %v1616, %v1628
  %v1637 = vadd.f32 %v1617, %v1628
  %v1638 = vadd.f32 %v1618, %v1628
  %v1639 = vadd.f32 %v1619, %v1628
  %v1640 = vadd.f32 %v1620, %v1628
  %v1641 = vadd.f32 %v1621, %v1628
  %v1642 = vadd.f32 %v1622, %v1628
  %v1643 = vadd.f32 %v1623, %v1628
  %v1644 = vadd.f32 %v1624, %v1628
  %v1645 = vadd.f32 %v1625, %v1628
  %v1646 = vsub.f32 0.0, %v1630
  %v1647 = vsub.f32 0.0, %v1631
  %v1648 = vsub.f32 0.0, %v1632
  %v1649 = vsub.f32 0.0, %v1633
  %v1650 = vsub.f32 0.0, %v1634
  %v1651 = vsub.f32 0.0, %v1635
  %v1652 = vsub.f32 0.0, %v1636
  %v1653 = vsub.f32 0.0, %v1637
  %v1654 = vsub.f32 0.0, %v1638
  %v1655 = vsub.f32 0.0, %v1639
  %v1656 = vsub.f32 0.0, %v1640
  %v1657 = vsub.f32 0.0, %v1641
  %v1658 = vsub.f32 0.0, %v1642
  %v1659 = vsub.f32 0.0, %v1643
  %v1660 = vsub.f32 0.0, %v1644
  %v1661 = vsub.f32 0.0, %v1645
  %v1662 = vmul.f32 %v1646, 1.442695
  %v1663 = vpow.pop %v1662
  %v1664 = vmul.f32 %v1647, 1.442695
  %v1665 = vpow.pop %v1664
  %v1666 = vmul.f32 %v1648, 1.442695
  %v1667 = vpow.pop %v1666
  %v1668 = vmul.f32 %v1649, 1.442695
  %v1669 = vpow.pop %v1668
  %v1670 = vmul.f32 %v1650, 1.442695
  %v1671 = vpow.pop %v1670
  %v1672 = vmul.f32 %v1651, 1.442695
  %v1673 = vpow.pop %v1672
  %v1674 = vmul.f32 %v1652, 1.442695
  %v1675 = vpow.pop %v1674
  %v1676 = vmul.f32 %v1653, 1.442695
  %v1677 = vpow.pop %v1676
  %v1678 = vmul.f32 %v1654, 1.442695
  %v1679 = vpow.pop %v1678
  %v1680 = vmul.f32 %v1655, 1.442695
  %v1681 = vpow.pop %v1680
  %v1682 = vmul.f32 %v1656, 1.442695
  %v1683 = vpow.pop %v1682
  %v1684 = vmul.f32 %v1657, 1.442695
  %v1685 = vpow.pop %v1684
  %v1686 = vmul.f32 %v1658, 1.442695
  %v1687 = vpow.pop %v1686
  %v1688 = vmul.f32 %v1659, 1.442695
  %v1689 = vpow.pop %v1688
  %v1690 = vmul.f32 %v1660, 1.442695
  %v1691 = vpow.pop %v1690
  %v1692 = vmul.f32 %v1661, 1.442695
  %v1693 = vpow.pop %v1692
  %v1694 = vadd.f32 %v1663, 1.0
  %v1695 = vadd.f32 %v1665, 1.0
  %v1696 = vadd.f32 %v1667, 1.0
  %v1697 = vadd.f32 %v1669, 1.0
  %v1698 = vadd.f32 %v1671, 1.0
  %v1699 = vadd.f32 %v1673, 1.0
  %v1700 = vadd.f32 %v1675, 1.0
  %v1701 = vadd.f32 %v1677, 1.0
  %v1702 = vadd.f32 %v1679, 1.0
  %v1703 = vadd.f32 %v1681, 1.0
  %v1704 = vadd.f32 %v1683, 1.0
  %v1705 = vadd.f32 %v1685, 1.0
  %v1706 = vadd.f32 %v1687, 1.0
  %v1707 = vadd.f32 %v1689, 1.0
  %v1708 = vadd.f32 %v1691, 1.0
  %v1709 = vadd.f32 %v1693, 1.0
  %v1710 = vrcp.pop %v1694
  %v1711 = vrcp.pop %v1695
  %v1712 = vrcp.pop %v1696
  %v1713 = vrcp.pop %v1697
  %v1714 = vrcp.pop %v1698
  %v1715 = vrcp.pop %v1699
  %v1716 = vrcp.pop %v1700
  %v1717 = vrcp.pop %v1701
  %v1718 = vrcp.pop %v1702
  %v1719 = vrcp.pop %v1703
  %v1720 = vrcp.pop %v1704
  %v1721 = vrcp.pop %v1705
  %v1722 = vrcp.pop %v1706
  %v1723 = vrcp.pop %v1707
  %v1724 = vrcp.pop %v1708
  %v1725 = vrcp.pop %v1709
  %v1726 = vmul.f32 %v1630, %v1710
  %v1727 = vmul.f32 %v1631, %v1711
  %v1728 = vmul.f32 %v1632, %v1712
  %v1729 = vmul.f32 %v1633, %v1713
  %v1730 = vmul.f32 %v1634, %v1714
  %v1731 = vmul.f32 %v1635, %v1715
  %v1732 = vmul.f32 %v1636, %v1716
  %v1733 = vmul.f32 %v1637, %v1717
  %v1734 = vmul.f32 %v1638, %v1718
  %v1735 = vmul.f32 %v1639, %v1719
  %v1736 = vmul.f32 %v1640, %v1720
  %v1737 = vmul.f32 %v1641, %v1721
  %v1738 = vmul.f32 %v1642, %v1722
  %v1739 = vmul.f32 %v1643, %v1723
  %v1740 = vmul.f32 %v1644, %v1724
  %v1741 = vmul.f32 %v1645, %v1725
  %vm1742 = vcmask 130048
  %1743 = vst.msk [vmem:[%s3] sm:$0xff] %vm1742, %v1726
  %1744 = vst.msk [vmem:[%s3 + $0x8] sm:$0xff] %vm1742, %v1727
  %1745 = vst.msk [vmem:[%s3 + $0x10] sm:$0xff] %vm1742, %v1728
  %1746 = vst.msk [vmem:[%s3 + $0x18] sm:$0xff] %vm1742, %v1729
  %1747 = vst.msk [vmem:[%s3 + $0x20] sm:$0xff] %vm1742, %v1730
  %1748 = vst.msk [vmem:[%s3 + $0x28] sm:$0xff] %vm1742, %v1731
  %1749 = vst.msk [vmem:[%s3 + $0x30] sm:$0xff] %vm1742, %v1732
  %1750 = vst.msk [vmem:[%s3 + $0x38] sm:$0xff] %vm1742, %v1733
  %1751 = vst.msk [vmem:[%s3 + $0x40] sm:$0xff] %vm1742, %v1734
  %1752 = vst.msk [vmem:[%s3 + $0x48] sm:$0xff] %vm1742, %v1735
  %1753 = vst.msk [vmem:[%s3 + $0x50] sm:$0xff] %vm1742, %v1736
  %1754 = vst.msk [vmem:[%s3 + $0x58] sm:$0xff] %vm1742, %v1737
  %1755 = vst.msk [vmem:[%s3 + $0x60] sm:$0xff] %vm1742, %v1738
  %1756 = vst.msk [vmem:[%s3 + $0x68] sm:$0xff] %vm1742, %v1739
  %1757 = vst.msk [vmem:[%s3 + $0x70] sm:$0xff] %vm1742, %v1740
  %1758 = vst.msk [vmem:[%s3 + $0x78] sm:$0xff] %vm1742, %v1741
  // Predicated region
  $region14: #{tpu_custom_call.1} parent=0 // pred_check
    _
  $region15: #{tpu_custom_call.1} parent=0 // pred_check_branch
    %1760 = sbr.rel (0) target = $region17
  $region16: #{tpu_custom_call.1} parent=0 // pred_region
    _
  $region17: #{tpu_custom_call.1} parent=0 // pred_fallthru
    _
  // Predicated region
  $region18: #{tpu_custom_call.1} parent=0 // pred_check
    _
  $region19: #{tpu_custom_call.1} parent=0 // pred_check_branch
    %1762 = sbr.rel (0) target = $region21
  $region20: #{tpu_custom_call.1} parent=0 // pred_region
    _
  $region21: #{tpu_custom_call.1} parent=0 // pred_fallthru
    _

</llo_original>
